<compile_context>
chip_gen: v7x
topology: tpu7x:2x2x1
jax: 0.10.0
libtpu: 0.0.40
codegen_flags: <defaults>
</compile_context>

<pallas_src>
import jax
import jax.numpy as jnp
import numpy as np
from jax.experimental import pallas as pl
from jax.experimental.pallas import tpu as pltpu


def _round_up(x, m):
    return ((x + m - 1) // m) * m


def _blockdiag(a, b):
    top = jnp.concatenate([a, jnp.zeros((a.shape[0], b.shape[1]), a.dtype)], axis=1)
    bot = jnp.concatenate([jnp.zeros((b.shape[0], a.shape[1]), a.dtype), b], axis=1)
    return jnp.concatenate([top, bot], axis=0)


# ----------------------------------------------------------------------------- kernel
def _make_kernel(meta):
    """Kernel factory: static dims / bias offsets are baked in via closure."""
    d1og, d2og = meta['d1og'], meta['d2og']
    HD, M, R, YPW = meta['HD'], meta['M'], meta['R'], meta['ypw']
    off = meta['bias_off']
    HZW = 2 * HD
    RM = R * M
    f32, bf16 = jnp.float32, jnp.bfloat16

    def kernel(v12_ref, whz_ref, wo_ref, f_ref, wc_ref, ball_ref, o_ref):
        v12 = v12_ref[...]                          # (TB, d1og+d2og) f32
        v1 = v12[:, :d1og]
        v2 = v12[:, d1og:]

        # lane-major Kronecker product: kron[:, i*d2og + j] = v1[:, i] * v2[:, j]
        # (f32 elementwise; no 3-D product reshape)
        kron = jnp.repeat(v1, d2og, axis=1) * jnp.tile(v2, (1, d1og))

        # one fused MXU launch for the two h-linears + the two bilinear forms
        # hz_in = [kron | v12]  (kron first -> all segments 128-lane aligned)
        hz_in = jnp.concatenate([kron.astype(bf16), v12.astype(bf16)], axis=1)
        b_hz = ball_ref[:, off['bhz']:off['bhz'] + HZW]
        hz = jnp.dot(hz_in, whz_ref[...], preferred_element_type=f32) + b_hz

        h12 = jnp.maximum(hz[:, :HD], 0.0)          # [ReLU(v1 Wh1+b) | ReLU(v2 Wh2+b)]
        z12 = hz[:, HD:]                            # [z1 | z2]
        g12 = (jax.nn.sigmoid(z12) * h12).astype(bf16)

        # fused o-linears (block-diagonal)
        bo = ball_ref[:, off['bo']:off['bo'] + HD]
        o12 = jnp.maximum(jnp.dot(g12, wo_ref[...], preferred_element_type=f32) + bo, 0.0)

        # low-rank multimodal fusion: fo[:, :RM]=(o1,1)@(f1*fw), fo[:, RM:]=(o2,1)@f2
        fbias = ball_ref[:, off['fbias']:off['fbias'] + 2 * RM]
        fo = jnp.dot(o12.astype(bf16), f_ref[...], preferred_element_type=f32) + fbias

        # out[b, m] = sum_r fo1[b, r*M+m] * fo2[b, r*M+m] + fb[m]
        prod = fo[:, :RM] * fo[:, RM:]              # both slices 128-aligned
        fb = ball_ref[:, off['fb']:off['fb'] + M]
        if (M % 128 != 0) and ((2 * M) % 128 == 0) and (R % 2 == 0):
            # full-vreg (2 ranks per 128 lanes) accumulation + one roll fold
            W2 = 2 * M
            acc = prod[:, :W2]
            for r in range(1, R // 2):
                acc = acc + prod[:, r * W2:(r + 1) * W2]
            acc = acc + pltpu.roll(acc, M, 1)
            out = acc[:, :M] + fb
        else:
            acc = prod[:, :M]
            for r in range(1, R):
                acc = acc + prod[:, r * M:(r + 1) * M]
            out = acc + fb

        # classifier head in f32 (Y_hat fidelity); wc zero-padded to YPW lanes
        bc = ball_ref[:, off['bc']:off['bc'] + YPW]
        logits = jnp.dot(out, wc_ref[...], preferred_element_type=f32) + bc
        yp = jax.nn.sigmoid(logits)                 # activation = 'Sigmoid'

        # single lane-dense output slab: [features | Y_prob_padded]
        o_ref[...] = jnp.concatenate([out, yp], axis=1)

    return kernel


# ----------------------------------------------------------------------------- wrapper
def fusion_model_forward(vec1, vec2, kp, *, block_b=512):
    meta = kp['meta']
    B = vec1.shape[0]
    d1og, d2og = meta['d1og'], meta['d2og']
    M, LD, YPW = meta['M'], meta['label_dim'], meta['ypw']
    slab_w = M + YPW

    # pre-concatenate the two modality vectors (one fewer input / in-kernel concat)
    v12 = jnp.concatenate([vec1, vec2], axis=1).astype(jnp.float32)

    # batch tiling: big tiles, but >= 2 parallel grid steps when B > 256 (two v7x TCs)
    if B <= 256:
        TB, Bp = B, B
    else:
        TB = min(block_b, -(-B // 2))
        TB = -(-TB // 8) * 8
        Bp = -(-B // TB) * TB
    if Bp != B:
        v12 = jnp.concatenate(
            [v12, jnp.zeros((Bp - B, v12.shape[1]), v12.dtype)], axis=0)

    weights = (kp['w_hz'], kp['wo_blk'], kp['f_blk'], kp['wc_pad'], kp['b_all'])
    # constant index_map -> weights stay resident in VMEM across the batch grid
    w_specs = [pl.BlockSpec(w.shape, lambda i: (0, 0)) for w in weights]

    slab = pl.pallas_call(
        _make_kernel(meta),
        grid=(Bp // TB,),
        in_specs=[pl.BlockSpec((TB, d1og + d2og), lambda i: (i, 0))] + w_specs,
        out_specs=pl.BlockSpec((TB, slab_w), lambda i: (i, 0)),
        out_shape=jax.ShapeDtypeStruct((Bp, slab_w), jnp.float32),
        compiler_params=pltpu.CompilerParams(dimension_semantics=("parallel",)),
    )(v12, *weights)

    slab = slab[:B]
    feats = slab[:, :M]
    y_prob = slab[:, M:M + LD]                      # slice BEFORE the threshold
    y_hat = (y_prob >= 0.5).astype(jnp.float32)
    return y_prob, y_hat, feats


# ----------------------------------------------------------------------------- params
def init_params(key, dim1_og=32, dim2_og=32, scale1=1, scale2=1,
                mmhid=64, rank=8, label_dim=2):
    d1 = dim1_og // scale1
    d2 = dim2_og // scale2
    ks = list(jax.random.split(key, 16))

    def lin(k, fan_in, fan_out):
        stdv = 1.0 / np.sqrt(fan_in)                  # init_max_weights
        w = stdv * jax.random.normal(k, (fan_in, fan_out), jnp.float32)
        b = jnp.zeros((1, fan_out), jnp.float32)
        return w, b

    wh1, bh1 = lin(ks[0], dim1_og, d1)
    wo1, bo1 = lin(ks[1], d1, d1)
    wh2, bh2 = lin(ks[2], dim2_og, d2)
    wo2, bo2 = lin(ks[3], d2, d2)

    # nn.Bilinear weights: (out, in1, in2)
    wz1 = (1.0 / np.sqrt(dim1_og)) * jax.random.normal(ks[4], (d1, dim1_og, dim2_og), jnp.float32)
    bz1 = jnp.zeros((1, d1), jnp.float32)
    wz2 = (1.0 / np.sqrt(dim1_og)) * jax.random.normal(ks[5], (d2, dim1_og, dim2_og), jnp.float32)
    bz2 = jnp.zeros((1, d2), jnp.float32)

    # LMF factors (rank, dim+1, mmhid), fusion weights (1, rank), bias (1, mmhid)
    f1 = 0.1 * jax.random.normal(ks[6], (rank, d1 + 1, mmhid), jnp.float32)
    f2 = 0.1 * jax.random.normal(ks[7], (rank, d2 + 1, mmhid), jnp.float32)
    fw = 0.1 * jax.random.normal(ks[8], (1, rank), jnp.float32)
    fb = 0.1 * jax.random.normal(ks[9], (1, mmhid), jnp.float32)

    wc, bc = lin(ks[10], mmhid, label_dim)

    return dict(
        wh1=wh1, bh1=bh1, wo1=wo1, bo1=bo1,
        wh2=wh2, bh2=bh2, wo2=wo2, bo2=bo2,
        wz1=wz1, bz1=bz1, wz2=wz2, bz2=bz2,
        f1=f1, f2=f2, fw=fw, fb=fb, wc=wc, bc=bc,
    )


def pack_kernel_params(p, weight_dtype=jnp.bfloat16):
    """Offline (host/XLA-side) fusion of the per-branch weights into the kernel layout."""
    dim1_og, d1 = p['wh1'].shape
    dim2_og, d2 = p['wh2'].shape
    rank, _, mmhid = p['f1'].shape
    label_dim = p['wc'].shape[1]

    HD = d1 + d2                 # width of h12 / g12 / o12
    HZW = 2 * HD                 # fused hz matmul output width ([h12 | z12])
    RM = rank * mmhid

    # h-linears: block-diag so [v1|v2] -> [h1|h2]
    wh_blk = _blockdiag(p['wh1'], p['wh2'])                              # (d1og+d2og, HD)
    # bilinear (out,in1,in2) -> (in1*in2, out); column-concat both branches
    wz1_2d = jnp.transpose(p['wz1'], (1, 2, 0)).reshape(dim1_og * dim2_og, d1)
    wz2_2d = jnp.transpose(p['wz2'], (1, 2, 0)).reshape(dim1_og * dim2_og, d2)
    wz_cat = jnp.concatenate([wz1_2d, wz2_2d], axis=1)                   # (d1og*d2og, HD)

    # one fused weight for [kron | v12] @ W -> [h12 | z12]
    k_kron = dim1_og * dim2_og
    k_v = dim1_og + dim2_og
    w_hz = jnp.zeros((k_kron + k_v, HZW), jnp.float32)
    w_hz = w_hz.at[:k_kron, HD:].set(wz_cat)       # kron rows feed the z columns
    w_hz = w_hz.at[k_kron:, :HD].set(wh_blk)       # v12  rows feed the h columns

    # fused o-linears
    wo_blk = _blockdiag(p['wo1'], p['wo2'])

    # LMF factors: fold fusion_weights into factor 1, flatten (rank, dim+1, M) -> (dim+1, rank*M)
    f1s = p['f1'] * p['fw'][0][:, None, None]
    f1_flat = jnp.transpose(f1s, (1, 0, 2)).reshape(d1 + 1, RM)
    f2_flat = jnp.transpose(p['f2'], (1, 0, 2)).reshape(d2 + 1, RM)
    f_blk = _blockdiag(f1_flat[:d1], f2_flat[:d2])                       # (HD, 2*RM)
    fbias = jnp.concatenate([f1_flat[d1:d1 + 1], f2_flat[d2:d2 + 1]], axis=1)  # (1, 2*RM)

    # classifier zero-padded so features+Y_prob form a lane-dense 128-multiple slab; kept f32
    ypw = max(_round_up(mmhid + label_dim, 128) - mmhid, label_dim)
    wc_pad = jnp.zeros((mmhid, ypw), jnp.float32).at[:, :label_dim].set(p['wc'])
    bc_pad = jnp.zeros((1, ypw), jnp.float32).at[:, :label_dim].set(p['bc'])

    # all biases consolidated into one (1, BW) array; every segment starts 128-aligned
    segs = [('bhz', HZW), ('bo', HD), ('fbias', 2 * RM), ('fb', mmhid), ('bc', ypw)]
    off, cur = {}, 0
    for name, w in segs:
        off[name] = cur
        cur += _round_up(w, 128)
    b_hz = jnp.concatenate([p['bh1'], p['bh2'], p['bz1'], p['bz2']], axis=1)
    bo12 = jnp.concatenate([p['bo1'], p['bo2']], axis=1)
    b_all = jnp.zeros((1, cur), jnp.float32)
    b_all = b_all.at[:, off['bhz']:off['bhz'] + HZW].set(b_hz)
    b_all = b_all.at[:, off['bo']:off['bo'] + HD].set(bo12)
    b_all = b_all.at[:, off['fbias']:off['fbias'] + 2 * RM].set(fbias)
    b_all = b_all.at[:, off['fb']:off['fb'] + mmhid].set(p['fb'])
    b_all = b_all.at[:, off['bc']:off['bc'] + ypw].set(bc_pad)

    meta = dict(d1og=dim1_og, d2og=dim2_og, HD=HD, M=mmhid, R=rank,
                label_dim=label_dim, ypw=ypw, bias_off=off, bias_width=cur)

    wd = weight_dtype
    return dict(w_hz=w_hz.astype(wd), wo_blk=wo_blk.astype(wd),
                f_blk=f_blk.astype(wd), wc_pad=wc_pad, b_all=b_all, meta=meta)


# ----------------------------------------------------------------------------- reference (plain JAX)
def reference_forward(vec1, vec2, p):
    hi = jax.lax.Precision.HIGHEST
    B = vec1.shape[0]
    h1 = jax.nn.relu(jnp.dot(vec1, p['wh1'], precision=hi) + p['bh1'])
    z1 = jnp.einsum('bi,kij,bj->bk', vec1, p['wz1'], vec2, precision=hi) + p['bz1']
    o1 = jax.nn.relu(jnp.dot(jax.nn.sigmoid(z1) * h1, p['wo1'], precision=hi) + p['bo1'])

    h2 = jax.nn.relu(jnp.dot(vec2, p['wh2'], precision=hi) + p['bh2'])
    z2 = jnp.einsum('bi,kij,bj->bk', vec1, p['wz2'], vec2, precision=hi) + p['bz2']
    o2 = jax.nn.relu(jnp.dot(jax.nn.sigmoid(z2) * h2, p['wo2'], precision=hi) + p['bo2'])

    ones = jnp.ones((B, 1), jnp.float32)
    o1c = jnp.concatenate([o1, ones], axis=1)
    o2c = jnp.concatenate([o2, ones], axis=1)
    fo1 = jnp.einsum('bi,rim->rbm', o1c, p['f1'], precision=hi)
    fo2 = jnp.einsum('bi,rim->rbm', o2c, p['f2'], precision=hi)
    f12 = fo1 * fo2
    out = jnp.einsum('r,rbm->bm', p['fw'][0], f12, precision=hi) + p['fb']
    yp = jax.nn.sigmoid(jnp.dot(out, p['wc'], precision=hi) + p['bc'])
    yhat = (yp >= 0.5).astype(jnp.float32)
    return yp, yhat, out


# ----------------------------------------------------------------------------- main
if __name__ == "__main__":
    B = 2
    DIM1 = DIM2 = 32
    MMHID = 64
    RANK = 8
    LABEL_DIM = 2

    key = jax.random.PRNGKey(0)
    kp_key, k1, k2 = jax.random.split(key, 3)
    params = init_params(kp_key, dim1_og=DIM1, dim2_og=DIM2, mmhid=MMHID,
                         rank=RANK, label_dim=LABEL_DIM)
    kparams = pack_kernel_params(params)

    vec1 = jax.random.normal(k1, (B, DIM1), jnp.float32)
    vec2 = jax.random.normal(k2, (B, DIM2), jnp.float32)

    y_prob, y_hat, features = jax.block_until_ready(
        fusion_model_forward(vec1, vec2, kparams))

    ref_prob, ref_hat, ref_feat = reference_forward(vec1, vec2, params)

    assert y_prob.shape == (B, LABEL_DIM) and y_hat.shape == (B, LABEL_DIM)
    assert features.shape == (B, MMHID)
    # bf16 MXU weights vs Precision.HIGHEST f32 reference -> 2e-2 tolerance
    np.testing.assert_allclose(np.asarray(y_prob), np.asarray(ref_prob), rtol=2e-2, atol=2e-2)
    np.testing.assert_allclose(np.asarray(features), np.asarray(ref_feat), rtol=2e-2, atol=2e-2)

    print("KERNEL_OK")
</pallas_src>

<mosaic_0001>
module attributes {stable_mosaic.version = 11 : i64} {
  func.func @kernel(%arg0: i32, %arg1: memref<2x64xf32, #tpu.memory_space<vmem>>, %arg2: memref<1088x128xbf16, #tpu.memory_space<vmem>>, %arg3: memref<64x64xbf16, #tpu.memory_space<vmem>>, %arg4: memref<64x1024xbf16, #tpu.memory_space<vmem>>, %arg5: memref<64x64xf32, #tpu.memory_space<vmem>>, %arg6: memref<1x1536xf32, #tpu.memory_space<vmem>>, %arg7: memref<2x128xf32, #tpu.memory_space<vmem>>) attributes {dimension_semantics = [#tpu.dimension_semantics<parallel>], iteration_bounds = array<i64: 1>, scalar_prefetch = 0 : i64, scratch_operands = 0 : i64, tpu.core_type = #tpu.core_type<tc>, window_params = [{transform_indices = @transform_0, window_bounds = array<i64: 2, 64>}, {pipeline_mode = #tpu.pipeline_mode<synchronous>, transform_indices = @transform_1, window_bounds = array<i64: 1088, 128>}, {pipeline_mode = #tpu.pipeline_mode<synchronous>, transform_indices = @transform_2, window_bounds = array<i64: 64, 64>}, {pipeline_mode = #tpu.pipeline_mode<synchronous>, transform_indices = @transform_3, window_bounds = array<i64: 64, 1024>}, {pipeline_mode = #tpu.pipeline_mode<synchronous>, transform_indices = @transform_4, window_bounds = array<i64: 64, 64>}, {pipeline_mode = #tpu.pipeline_mode<synchronous>, transform_indices = @transform_5, window_bounds = array<i64: 1, 1536>}, {transform_indices = @transform_6, window_bounds = array<i64: 2, 128>}]} {
    %c0 = arith.constant 0 : index
    %c0_0 = arith.constant 0 : index
    %0 = vector.load %arg1[%c0, %c0_0] : memref<2x64xf32, #tpu.memory_space<vmem>>, vector<2x64xf32>
    %1 = vector.extract_strided_slice %0 {offsets = [0, 0], sizes = [2, 32], strides = [1, 1]} : vector<2x64xf32> to vector<2x32xf32>
    %2 = vector.extract_strided_slice %0 {offsets = [0, 32], sizes = [2, 32], strides = [1, 1]} : vector<2x64xf32> to vector<2x32xf32>
    %3 = vector.shape_cast %1 : vector<2x32xf32> to vector<2x32x1xf32>
    %4 = vector.broadcast %3 : vector<2x32x1xf32> to vector<2x32x32xf32>
    %5 = vector.shape_cast %4 : vector<2x32x32xf32> to vector<2x1024xf32>
    %6 = tpu.concatenate %2, %2, %2, %2, %2, %2, %2, %2, %2, %2, %2, %2, %2, %2, %2, %2, %2, %2, %2, %2, %2, %2, %2, %2, %2, %2, %2, %2, %2, %2, %2, %2 in 1 : vector<2x32xf32>, vector<2x32xf32>, vector<2x32xf32>, vector<2x32xf32>, vector<2x32xf32>, vector<2x32xf32>, vector<2x32xf32>, vector<2x32xf32>, vector<2x32xf32>, vector<2x32xf32>, vector<2x32xf32>, vector<2x32xf32>, vector<2x32xf32>, vector<2x32xf32>, vector<2x32xf32>, vector<2x32xf32>, vector<2x32xf32>, vector<2x32xf32>, vector<2x32xf32>, vector<2x32xf32>, vector<2x32xf32>, vector<2x32xf32>, vector<2x32xf32>, vector<2x32xf32>, vector<2x32xf32>, vector<2x32xf32>, vector<2x32xf32>, vector<2x32xf32>, vector<2x32xf32>, vector<2x32xf32>, vector<2x32xf32>, vector<2x32xf32> -> vector<2x1024xf32>
    %7 = arith.mulf %5, %6 : vector<2x1024xf32>
    %8 = arith.truncf %7 : vector<2x1024xf32> to vector<2x1024xbf16>
    %9 = arith.truncf %0 : vector<2x64xf32> to vector<2x64xbf16>
    %10 = tpu.concatenate %8, %9 in 1 : vector<2x1024xbf16>, vector<2x64xbf16> -> vector<2x1088xbf16>
    %c0_1 = arith.constant 0 : index
    %c0_2 = arith.constant 0 : index
    %11 = vector.load %arg6[%c0_1, %c0_2] : memref<1x1536xf32, #tpu.memory_space<vmem>>, vector<1x128xf32>
    %c0_3 = arith.constant 0 : index
    %c0_4 = arith.constant 0 : index
    %12 = vector.load %arg2[%c0_3, %c0_4] : memref<1088x128xbf16, #tpu.memory_space<vmem>>, vector<1088x128xbf16>
    %cst = arith.constant dense<0.000000e+00> : vector<2x128xf32>
    %13 = tpu.matmul %10, %12, %cst {dimension_numbers = #tpu.dot_dimension_numbers<[1], [0], [0], [1], [0, 0, 1, 1], [], []>} : vector<2x1088xbf16>, vector<1088x128xbf16>, vector<2x128xf32> -> vector<2x128xf32>
    %14 = vector.broadcast %11 : vector<1x128xf32> to vector<2x128xf32>
    %15 = arith.addf %13, %14 : vector<2x128xf32>
    %16 = vector.extract_strided_slice %15 {offsets = [0, 0], sizes = [2, 64], strides = [1, 1]} : vector<2x128xf32> to vector<2x64xf32>
    %cst_5 = arith.constant 0.000000e+00 : f32
    %17 = vector.broadcast %cst_5 : f32 to vector<2x64xf32>
    %18 = arith.maximumf %16, %17 : vector<2x64xf32>
    %19 = vector.extract_strided_slice %15 {offsets = [0, 64], sizes = [2, 64], strides = [1, 1]} : vector<2x128xf32> to vector<2x64xf32>
    %20 = arith.negf %19 : vector<2x64xf32>
    %21 = math.exp %20 : vector<2x64xf32>
    %cst_6 = arith.constant 1.000000e+00 : f32
    %22 = vector.broadcast %cst_6 : f32 to vector<2x64xf32>
    %23 = arith.addf %22, %21 : vector<2x64xf32>
    %24 = arith.divf %22, %23 : vector<2x64xf32>
    %25 = arith.mulf %24, %18 : vector<2x64xf32>
    %26 = arith.truncf %25 : vector<2x64xf32> to vector<2x64xbf16>
    %c0_7 = arith.constant 0 : index
    %c128 = arith.constant 128 : index
    %27 = vector.load %arg6[%c0_7, %c128] : memref<1x1536xf32, #tpu.memory_space<vmem>>, vector<1x64xf32>
    %c0_8 = arith.constant 0 : index
    %c0_9 = arith.constant 0 : index
    %28 = vector.load %arg3[%c0_8, %c0_9] : memref<64x64xbf16, #tpu.memory_space<vmem>>, vector<64x64xbf16>
    %cst_10 = arith.constant dense<0.000000e+00> : vector<2x64xf32>
    %29 = tpu.matmul %26, %28, %cst_10 {dimension_numbers = #tpu.dot_dimension_numbers<[1], [0], [0], [1], [0, 0, 1, 1], [], []>} : vector<2x64xbf16>, vector<64x64xbf16>, vector<2x64xf32> -> vector<2x64xf32>
    %30 = vector.broadcast %27 : vector<1x64xf32> to vector<2x64xf32>
    %31 = arith.addf %29, %30 : vector<2x64xf32>
    %cst_11 = arith.constant 0.000000e+00 : f32
    %32 = vector.broadcast %cst_11 : f32 to vector<2x64xf32>
    %33 = arith.maximumf %31, %32 : vector<2x64xf32>
    %c0_12 = arith.constant 0 : index
    %c256 = arith.constant 256 : index
    %34 = vector.load %arg6[%c0_12, %c256] : memref<1x1536xf32, #tpu.memory_space<vmem>>, vector<1x1024xf32>
    %35 = arith.truncf %33 : vector<2x64xf32> to vector<2x64xbf16>
    %c0_13 = arith.constant 0 : index
    %c0_14 = arith.constant 0 : index
    %36 = vector.load %arg4[%c0_13, %c0_14] : memref<64x1024xbf16, #tpu.memory_space<vmem>>, vector<64x1024xbf16>
    %cst_15 = arith.constant dense<0.000000e+00> : vector<2x1024xf32>
    %37 = tpu.matmul %35, %36, %cst_15 {dimension_numbers = #tpu.dot_dimension_numbers<[1], [0], [0], [1], [0, 0, 1, 1], [], []>} : vector<2x64xbf16>, vector<64x1024xbf16>, vector<2x1024xf32> -> vector<2x1024xf32>
    %38 = vector.broadcast %34 : vector<1x1024xf32> to vector<2x1024xf32>
    %39 = arith.addf %37, %38 : vector<2x1024xf32>
    %40 = vector.extract_strided_slice %39 {offsets = [0, 0], sizes = [2, 512], strides = [1, 1]} : vector<2x1024xf32> to vector<2x512xf32>
    %41 = vector.extract_strided_slice %39 {offsets = [0, 512], sizes = [2, 512], strides = [1, 1]} : vector<2x1024xf32> to vector<2x512xf32>
    %42 = arith.mulf %40, %41 : vector<2x512xf32>
    %c0_16 = arith.constant 0 : index
    %c1280 = arith.constant 1280 : index
    %43 = vector.load %arg6[%c0_16, %c1280] : memref<1x1536xf32, #tpu.memory_space<vmem>>, vector<1x64xf32>
    %44 = vector.extract_strided_slice %42 {offsets = [0, 0], sizes = [2, 128], strides = [1, 1]} : vector<2x512xf32> to vector<2x128xf32>
    %45 = vector.extract_strided_slice %42 {offsets = [0, 128], sizes = [2, 128], strides = [1, 1]} : vector<2x512xf32> to vector<2x128xf32>
    %46 = arith.addf %44, %45 : vector<2x128xf32>
    %47 = vector.extract_strided_slice %42 {offsets = [0, 256], sizes = [2, 128], strides = [1, 1]} : vector<2x512xf32> to vector<2x128xf32>
    %48 = arith.addf %46, %47 : vector<2x128xf32>
    %49 = vector.extract_strided_slice %42 {offsets = [0, 384], sizes = [2, 128], strides = [1, 1]} : vector<2x512xf32> to vector<2x128xf32>
    %50 = arith.addf %48, %49 : vector<2x128xf32>
    %c64_i32 = arith.constant 64 : i32
    %51 = tpu.dynamic_rotate %50 by %c64_i32 dim 1 : vector<2x128xf32>, i32 -> vector<2x128xf32>
    %52 = arith.addf %50, %51 : vector<2x128xf32>
    %53 = vector.extract_strided_slice %52 {offsets = [0, 0], sizes = [2, 64], strides = [1, 1]} : vector<2x128xf32> to vector<2x64xf32>
    %54 = vector.broadcast %43 : vector<1x64xf32> to vector<2x64xf32>
    %55 = arith.addf %53, %54 : vector<2x64xf32>
    %c0_17 = arith.constant 0 : index
    %c1408 = arith.constant 1408 : index
    %56 = vector.load %arg6[%c0_17, %c1408] : memref<1x1536xf32, #tpu.memory_space<vmem>>, vector<1x64xf32>
    %c0_18 = arith.constant 0 : index
    %c0_19 = arith.constant 0 : index
    %57 = vector.load %arg5[%c0_18, %c0_19] : memref<64x64xf32, #tpu.memory_space<vmem>>, vector<64x64xf32>
    %cst_20 = arith.constant dense<0.000000e+00> : vector<2x64xf32>
    %58 = tpu.matmul %55, %57, %cst_20 {dimension_numbers = #tpu.dot_dimension_numbers<[1], [0], [0], [1], [0, 0, 1, 1], [], []>} : vector<2x64xf32>, vector<64x64xf32>, vector<2x64xf32> -> vector<2x64xf32>
    %59 = vector.broadcast %56 : vector<1x64xf32> to vector<2x64xf32>
    %60 = arith.addf %58, %59 : vector<2x64xf32>
    %61 = arith.negf %60 : vector<2x64xf32>
    %62 = math.exp %61 : vector<2x64xf32>
    %cst_21 = arith.constant 1.000000e+00 : f32
    %63 = vector.broadcast %cst_21 : f32 to vector<2x64xf32>
    %64 = arith.addf %63, %62 : vector<2x64xf32>
    %65 = arith.divf %63, %64 : vector<2x64xf32>
    %66 = tpu.concatenate %55, %65 in 1 : vector<2x64xf32>, vector<2x64xf32> -> vector<2x128xf32>
    %c0_22 = arith.constant 0 : index
    %c0_23 = arith.constant 0 : index
    %67 = vector.load %arg7[%c0_22, %c0_23] : memref<2x128xf32, #tpu.memory_space<vmem>>, vector<2x128xf32>
    tpu.vector_store %arg7[%c0_22, %c0_23], %66 {strides = array<i32>} : memref<2x128xf32, #tpu.memory_space<vmem>>, vector<2x128xf32>,
    return
  }
  func.func @transform_0(%arg0: i32) -> (i32, i32) {
    %c0_i32 = arith.constant 0 : i32
    %c0_i32_0 = arith.constant 0 : i32
    return %arg0, %c0_i32 : i32, i32
  }
  func.func @transform_1(%arg0: i32) -> (i32, i32) {
    %c0_i32 = arith.constant 0 : i32
    %c0_i32_0 = arith.constant 0 : i32
    %c0_i32_1 = arith.constant 0 : i32
    return %c0_i32, %c0_i32_0 : i32, i32
  }
  func.func @transform_2(%arg0: i32) -> (i32, i32) {
    %c0_i32 = arith.constant 0 : i32
    %c0_i32_0 = arith.constant 0 : i32
    %c0_i32_1 = arith.constant 0 : i32
    return %c0_i32, %c0_i32_0 : i32, i32
  }
  func.func @transform_3(%arg0: i32) -> (i32, i32) {
    %c0_i32 = arith.constant 0 : i32
    %c0_i32_0 = arith.constant 0 : i32
    %c0_i32_1 = arith.constant 0 : i32
    return %c0_i32, %c0_i32_0 : i32, i32
  }
  func.func @transform_4(%arg0: i32) -> (i32, i32) {
    %c0_i32 = arith.constant 0 : i32
    %c0_i32_0 = arith.constant 0 : i32
    %c0_i32_1 = arith.constant 0 : i32
    return %c0_i32, %c0_i32_0 : i32, i32
  }
  func.func @transform_5(%arg0: i32) -> (i32, i32) {
    %c0_i32 = arith.constant 0 : i32
    %c0_i32_0 = arith.constant 0 : i32
    %c0_i32_1 = arith.constant 0 : i32
    return %c0_i32, %c0_i32_0 : i32, i32
  }
  func.func @transform_6(%arg0: i32) -> (i32, i32) {
    %c0_i32 = arith.constant 0 : i32
    %c0_i32_0 = arith.constant 0 : i32
    return %arg0, %c0_i32 : i32, i32
  }
}

</mosaic_0001>

<llo_original>
// kernel: tpu_custom_call.1
$region0: #{tpu_custom_call.1}
  #allocation0 [shape = 'u32[]', space=smem, size = 0x4, offset = 0x4, fixed_abs, tag = 'smem constant byte address 0x4 - core index']
  #allocation1 [shape = 'u32[144,128]{1,0:T(1,128)}', space=vmem, size = 0x12000, scoped, tag = 'internal scratch']
  %s0 = inlined_call_operand.hbm [shape: f32[2,64], index: 0, kind: input, shape index: {}]
  %s1 = inlined_call_operand.hbm [shape: bf16[1088,128], index: 1, kind: input, shape index: {}]
  %s2 = inlined_call_operand.hbm [shape: bf16[64,64], index: 2, kind: input, shape index: {}]
  %s3 = inlined_call_operand.hbm [shape: bf16[64,1024], index: 3, kind: input, shape index: {}]
  %s4 = inlined_call_operand.hbm [shape: f32[64,64], index: 4, kind: input, shape index: {}]
  %s5 = inlined_call_operand.vmem [shape: f32[1,1536], index: 5, kind: input, shape index: {}]
  %s6 = inlined_call_operand.hbm [shape: f32[2,128], index: 6, kind: output, shape index: {}]
  %s7 = sld [smem:[#allocation0]]
  $region54: #{tpu_custom_call.1} parent=0
    _
  %s9 = ssub.s32 1, %s7
  %s10 = scalar_select 0, %s9, %s7
  $region1: #{tpu_custom_call.1} parent=0
    #allocation2 [shape = 'u8[1024]{0}', space=vmem, size = 0x400, scoped, tag = 'input window, operand 0, single buffered']
    #allocation3 [shape = 's32[1]{0}', space=sflag, size = 0x4, scoped, tag = 'scoped memory for tpu_custom_call.1']
    #allocation4 [shape = 's32[1]{0}', space=sflag, size = 0x4, scoped, tag = 'scoped memory for tpu_custom_call.1']
    #allocation5 [shape = 'u8[278528]{0}', space=vmem, size = 0x44000, scoped, tag = 'input window, operand 1, single buffered']
    #allocation6 [shape = 's32[1]{0}', space=sflag, size = 0x4, scoped, tag = 'scoped memory for tpu_custom_call.1']
    #allocation7 [shape = 'u8[16384]{0}', space=vmem, size = 0x4000, scoped, tag = 'input window, operand 2, single buffered']
    #allocation8 [shape = 'u8[131072]{0}', space=vmem, size = 0x20000, scoped, tag = 'input window, operand 3, single buffered']
    #allocation9 [shape = 's32[1]{0}', space=sflag, size = 0x4, scoped, tag = 'scoped memory for tpu_custom_call.1']
    #allocation10 [shape = 'u8[32768]{0}', space=vmem, size = 0x8000, scoped, tag = 'input window, operand 4, single buffered']
    #allocation11 [shape = 'u8[1024]{0}', space=vmem, size = 0x400, scoped, tag = 'output window, operand 0, single buffered']
    %11 = vsyncpa [#allocation3], 0
    %12 = vsyncpa [#allocation6], 0
    %13 = vsyncpa [#allocation9], 0
    %14 = vsyncpa [#allocation4], 0
    // Predicated region
    $region2: #{tpu_custom_call.1} parent=1 // pred_check
      _
    $region3: #{tpu_custom_call.1} parent=1 // pred_check_branch
      %16 = sbr.rel (0) target = $region5
    $region4: #{tpu_custom_call.1} parent=1 // pred_region
      %s18 = ssub.s32 32, 32
      %19 = vsyncadd [#allocation3], %s18
      %s21 = sshll.u32 [#allocation2], 4
      %s22 = int_to_ptr.vmem [resolvable:$true] %s21
      %24 = dma.hbm_to_vmem [thread:$0]  %s0, 32, %s22, [#allocation3]
    $region5: #{tpu_custom_call.1} parent=1 // pred_fallthru
      _
    // Predicated region
    $region6: #{tpu_custom_call.1} parent=1 // pred_check
      _
    $region7: #{tpu_custom_call.1} parent=1 // pred_check_branch
      %26 = sbr.rel (0) target = $region9
    $region8: #{tpu_custom_call.1} parent=1 // pred_region
      %s28 = ssub.s32 8704, 8704
      %29 = vsyncadd [#allocation6], %s28
      %s30 = sshll.u32 [#allocation5], 4
      %s31 = int_to_ptr.vmem [resolvable:$true] %s30
      %36 = dma.hbm_to_vmem [thread:$0]  %s1, 8704, %s31, [#allocation6], 64, 64, 4
    $region9: #{tpu_custom_call.1} parent=1 // pred_fallthru
      _
    // Predicated region
    $region10: #{tpu_custom_call.1} parent=1 // pred_check
      _
    $region11: #{tpu_custom_call.1} parent=1 // pred_check_branch
      %38 = sbr.rel (0) target = $region13
    $region12: #{tpu_custom_call.1} parent=1 // pred_region
      %s40 = ssub.s32 512, 512
      %41 = vsyncadd [#allocation6], %s40
      %s42 = sshll.u32 [#allocation7], 4
      %s43 = int_to_ptr.vmem [resolvable:$true] %s42
      %48 = dma.hbm_to_vmem [thread:$0]  %s2, 512, %s43, [#allocation6], 64, 64, 4
    $region13: #{tpu_custom_call.1} parent=1 // pred_fallthru
      _
    // Predicated region
    $region14: #{tpu_custom_call.1} parent=1 // pred_check
      _
    $region15: #{tpu_custom_call.1} parent=1 // pred_check_branch
      %50 = sbr.rel (0) target = $region17
    $region16: #{tpu_custom_call.1} parent=1 // pred_region
      %s52 = ssub.s32 4096, 4096
      %53 = vsyncadd [#allocation9], %s52
      %s54 = sshll.u32 [#allocation8], 4
      %s55 = int_to_ptr.vmem [resolvable:$true] %s54
      %60 = dma.hbm_to_vmem [thread:$0]  %s3, 4096, %s55, [#allocation9], 512, 512, 32
    $region17: #{tpu_custom_call.1} parent=1 // pred_fallthru
      _
    // Predicated region
    $region18: #{tpu_custom_call.1} parent=1 // pred_check
      _
    $region19: #{tpu_custom_call.1} parent=1 // pred_check_branch
      %62 = sbr.rel (0) target = $region21
    $region20: #{tpu_custom_call.1} parent=1 // pred_region
      %s64 = ssub.s32 1024, 1024
      %65 = vsyncadd [#allocation9], %s64
      %s66 = sshll.u32 [#allocation10], 4
      %s67 = int_to_ptr.vmem [resolvable:$true] %s66
      %72 = dma.hbm_to_vmem [thread:$0]  %s4, 1024, %s67, [#allocation9], 128, 128, 8
    $region21: #{tpu_custom_call.1} parent=1 // pred_fallthru
      _
    // Predicated region
    $region22: #{tpu_custom_call.1} parent=1 // pred_check
      _
    $region23: #{tpu_custom_call.1} parent=1 // pred_check_branch
      %74 = sbr.rel (0) target = $region25
    $region24: #{tpu_custom_call.1} parent=1 // pred_region
      _
    $region25: #{tpu_custom_call.1} parent=1 // pred_fallthru
      _
    // Predicated region
    $region26: #{tpu_custom_call.1} parent=1 // pred_check
      _
    $region27: #{tpu_custom_call.1} parent=1 // pred_check_branch
      %76 = sbr.rel (0) target = $region29
    $region28: #{tpu_custom_call.1} parent=1 // pred_region
      %77 = dma.done [#allocation3], 32
    $region29: #{tpu_custom_call.1} parent=1 // pred_fallthru
      _
    // Predicated region
    $region30: #{tpu_custom_call.1} parent=1 // pred_check
      _
    $region31: #{tpu_custom_call.1} parent=1 // pred_check_branch
      %79 = sbr.rel (0) target = $region33
    $region32: #{tpu_custom_call.1} parent=1 // pred_region
      %80 = dma.done [#allocation6], 8704
    $region33: #{tpu_custom_call.1} parent=1 // pred_fallthru
      _
    // Predicated region
    $region34: #{tpu_custom_call.1} parent=1 // pred_check
      _
    $region35: #{tpu_custom_call.1} parent=1 // pred_check_branch
      %82 = sbr.rel (0) target = $region37
    $region36: #{tpu_custom_call.1} parent=1 // pred_region
      %83 = dma.done [#allocation6], 512
    $region37: #{tpu_custom_call.1} parent=1 // pred_fallthru
      _
    // Predicated region
    $region38: #{tpu_custom_call.1} parent=1 // pred_check
      _
    $region39: #{tpu_custom_call.1} parent=1 // pred_check_branch
      %85 = sbr.rel (0) target = $region41
    $region40: #{tpu_custom_call.1} parent=1 // pred_region
      %86 = dma.done [#allocation9], 4096
    $region41: #{tpu_custom_call.1} parent=1 // pred_fallthru
      _
    // Predicated region
    $region42: #{tpu_custom_call.1} parent=1 // pred_check
      _
    $region43: #{tpu_custom_call.1} parent=1 // pred_check_branch
      %88 = sbr.rel (0) target = $region45
    $region44: #{tpu_custom_call.1} parent=1 // pred_region
      %89 = dma.done [#allocation9], 1024
    $region45: #{tpu_custom_call.1} parent=1 // pred_fallthru
      _
    %v91 = vld [vmem:[#allocation2] sm:$0x3]
    %v92 = vlaneseq
    %v93 = vshrl.u32 %v92, 7
    %v94 = vsub.s32 0, %v93
    %v95 = vrot.slane %v91, %v94
    %97 = vbcast.lane.b32.xlu0 %v95, 256
    %v98 = vpop.permute.xlu0 %97
    %s100 = sor.u32 256, 8
    %101 = vbcast.lane.b32.xlu0 %v95, %s100
    %v102 = vpop.permute.xlu0 %101
    %s104 = sor.u32 256, 16
    %105 = vbcast.lane.b32.xlu0 %v95, %s104
    %v106 = vpop.permute.xlu0 %105
    %s108 = sor.u32 256, 24
    %109 = vbcast.lane.b32.xlu0 %v95, %s108
    %v110 = vpop.permute.xlu0 %109
    %v111 = vlaneseq
    %v112 = vshrl.u32 %v111, 7
    %v113 = vsub.s32 1, %v112
    %v114 = vrot.slane %v91, %v113
    %116 = vbcast.lane.b32.xlu0 %v114, 256
    %v117 = vpop.permute.xlu0 %116
    %s119 = sor.u32 256, 8
    %120 = vbcast.lane.b32.xlu0 %v114, %s119
    %v121 = vpop.permute.xlu0 %120
    %s123 = sor.u32 256, 16
    %124 = vbcast.lane.b32.xlu0 %v114, %s123
    %v125 = vpop.permute.xlu0 %124
    %s127 = sor.u32 256, 24
    %128 = vbcast.lane.b32.xlu0 %v114, %s127
    %v129 = vpop.permute.xlu0 %128
    %v130 = vcombine.high %v98, 0.0
    %v132 = vunpack.c.l.s4 1983009808
    %v133 = vunpack.c.0.s8 %v132
    %v134 = vlaneseq
    %v135 = vshrl.u32 %v134, 7
    %v136 = vsub.s32 %v133, %v135
    %v137 = vrot.slane %v98, %v136
    %v139 = vunpack.c.l.s4 1983009808
    %v140 = vunpack.c.0.s8 %v139
    %v141 = vlaneseq
    %v142 = vshrl.u32 %v141, 7
    %v143 = vsub.s32 %v140, %v142
    %v144 = vrot.slane %v130, %v143
    %v145 = vcombine.high %v117, 0.0
    %v147 = vunpack.c.l.s4 1983009808
    %v148 = vunpack.c.0.s8 %v147
    %v149 = vlaneseq
    %v150 = vshrl.u32 %v149, 7
    %v151 = vsub.s32 %v148, %v150
    %v152 = vrot.slane %v117, %v151
    %v154 = vunpack.c.l.s4 1983009808
    %v155 = vunpack.c.0.s8 %v154
    %v156 = vlaneseq
    %v157 = vshrl.u32 %v156, 7
    %v158 = vsub.s32 %v155, %v157
    %v159 = vrot.slane %v145, %v158
    %v160 = vcombine.low %v137, %v152
    %v161 = vcombine.high %v137, %v152
    %v163 = vunpack.c.l.s4 1934713408
    %v164 = vunpack.c.0.s8 %v163
    %v165 = vlaneseq
    %v166 = vshrl.u32 %v165, 7
    %v167 = vsub.s32 %v164, %v166
    %v168 = vrot.slane %v160, %v167
    %v170 = vunpack.c.l.s4 1934713408
    %v171 = vunpack.c.0.s8 %v170
    %v172 = vlaneseq
    %v173 = vshrl.u32 %v172, 7
    %v174 = vsub.s32 %v171, %v173
    %v175 = vrot.slane %v161, %v174
    %v176 = vcombine.low %v144, %v159
    %v177 = vcombine.high %v144, %v159
    %v179 = vunpack.c.l.s4 1934713408
    %v180 = vunpack.c.0.s8 %v179
    %v181 = vlaneseq
    %v182 = vshrl.u32 %v181, 7
    %v183 = vsub.s32 %v180, %v182
    %v184 = vrot.slane %v176, %v183
    %v186 = vunpack.c.l.s4 1934713408
    %v187 = vunpack.c.0.s8 %v186
    %v188 = vlaneseq
    %v189 = vshrl.u32 %v188, 7
    %v190 = vsub.s32 %v187, %v189
    %v191 = vrot.slane %v177, %v190
    %v192 = vcombine.high %v168, 0.0
    %v193 = vcombine.high %v175, 0.0
    %v194 = vcombine.high %v184, 0.0
    %v195 = vcombine.high %v191, 0.0
    %v196 = vcombine.high %v102, 0.0
    %v198 = vunpack.c.l.s4 1983009808
    %v199 = vunpack.c.0.s8 %v198
    %v200 = vlaneseq
    %v201 = vshrl.u32 %v200, 7
    %v202 = vsub.s32 %v199, %v201
    %v203 = vrot.slane %v102, %v202
    %v205 = vunpack.c.l.s4 1983009808
    %v206 = vunpack.c.0.s8 %v205
    %v207 = vlaneseq
    %v208 = vshrl.u32 %v207, 7
    %v209 = vsub.s32 %v206, %v208
    %v210 = vrot.slane %v196, %v209
    %v211 = vcombine.high %v121, 0.0
    %v213 = vunpack.c.l.s4 1983009808
    %v214 = vunpack.c.0.s8 %v213
    %v215 = vlaneseq
    %v216 = vshrl.u32 %v215, 7
    %v217 = vsub.s32 %v214, %v216
    %v218 = vrot.slane %v121, %v217
    %v220 = vunpack.c.l.s4 1983009808
    %v221 = vunpack.c.0.s8 %v220
    %v222 = vlaneseq
    %v223 = vshrl.u32 %v222, 7
    %v224 = vsub.s32 %v221, %v223
    %v225 = vrot.slane %v211, %v224
    %v226 = vcombine.low %v203, %v218
    %v227 = vcombine.high %v203, %v218
    %v229 = vunpack.c.l.s4 1934713408
    %v230 = vunpack.c.0.s8 %v229
    %v231 = vlaneseq
    %v232 = vshrl.u32 %v231, 7
    %v233 = vsub.s32 %v230, %v232
    %v234 = vrot.slane %v226, %v233
    %v236 = vunpack.c.l.s4 1934713408
    %v237 = vunpack.c.0.s8 %v236
    %v238 = vlaneseq
    %v239 = vshrl.u32 %v238, 7
    %v240 = vsub.s32 %v237, %v239
    %v241 = vrot.slane %v227, %v240
    %v242 = vcombine.low %v210, %v225
    %v243 = vcombine.high %v210, %v225
    %v245 = vunpack.c.l.s4 1934713408
    %v246 = vunpack.c.0.s8 %v245
    %v247 = vlaneseq
    %v248 = vshrl.u32 %v247, 7
    %v249 = vsub.s32 %v246, %v248
    %v250 = vrot.slane %v242, %v249
    %v252 = vunpack.c.l.s4 1934713408
    %v253 = vunpack.c.0.s8 %v252
    %v254 = vlaneseq
    %v255 = vshrl.u32 %v254, 7
    %v256 = vsub.s32 %v253, %v255
    %v257 = vrot.slane %v243, %v256
    %v258 = vcombine.high %v234, 0.0
    %v259 = vcombine.high %v241, 0.0
    %v260 = vcombine.high %v250, 0.0
    %v261 = vcombine.high %v257, 0.0
    %v262 = vcombine.high %v106, 0.0
    %v264 = vunpack.c.l.s4 1983009808
    %v265 = vunpack.c.0.s8 %v264
    %v266 = vlaneseq
    %v267 = vshrl.u32 %v266, 7
    %v268 = vsub.s32 %v265, %v267
    %v269 = vrot.slane %v106, %v268
    %v271 = vunpack.c.l.s4 1983009808
    %v272 = vunpack.c.0.s8 %v271
    %v273 = vlaneseq
    %v274 = vshrl.u32 %v273, 7
    %v275 = vsub.s32 %v272, %v274
    %v276 = vrot.slane %v262, %v275
    %v277 = vcombine.high %v125, 0.0
    %v279 = vunpack.c.l.s4 1983009808
    %v280 = vunpack.c.0.s8 %v279
    %v281 = vlaneseq
    %v282 = vshrl.u32 %v281, 7
    %v283 = vsub.s32 %v280, %v282
    %v284 = vrot.slane %v125, %v283
    %v286 = vunpack.c.l.s4 1983009808
    %v287 = vunpack.c.0.s8 %v286
    %v288 = vlaneseq
    %v289 = vshrl.u32 %v288, 7
    %v290 = vsub.s32 %v287, %v289
    %v291 = vrot.slane %v277, %v290
    %v292 = vcombine.low %v269, %v284
    %v293 = vcombine.high %v269, %v284
    %v295 = vunpack.c.l.s4 1934713408
    %v296 = vunpack.c.0.s8 %v295
    %v297 = vlaneseq
    %v298 = vshrl.u32 %v297, 7
    %v299 = vsub.s32 %v296, %v298
    %v300 = vrot.slane %v292, %v299
    %v302 = vunpack.c.l.s4 1934713408
    %v303 = vunpack.c.0.s8 %v302
    %v304 = vlaneseq
    %v305 = vshrl.u32 %v304, 7
    %v306 = vsub.s32 %v303, %v305
    %v307 = vrot.slane %v293, %v306
    %v308 = vcombine.low %v276, %v291
    %v309 = vcombine.high %v276, %v291
    %v311 = vunpack.c.l.s4 1934713408
    %v312 = vunpack.c.0.s8 %v311
    %v313 = vlaneseq
    %v314 = vshrl.u32 %v313, 7
    %v315 = vsub.s32 %v312, %v314
    %v316 = vrot.slane %v308, %v315
    %v318 = vunpack.c.l.s4 1934713408
    %v319 = vunpack.c.0.s8 %v318
    %v320 = vlaneseq
    %v321 = vshrl.u32 %v320, 7
    %v322 = vsub.s32 %v319, %v321
    %v323 = vrot.slane %v309, %v322
    %v324 = vcombine.high %v300, 0.0
    %v325 = vcombine.high %v307, 0.0
    %v326 = vcombine.high %v316, 0.0
    %v327 = vcombine.high %v323, 0.0
    %v328 = vcombine.high %v110, 0.0
    %v330 = vunpack.c.l.s4 1983009808
    %v331 = vunpack.c.0.s8 %v330
    %v332 = vlaneseq
    %v333 = vshrl.u32 %v332, 7
    %v334 = vsub.s32 %v331, %v333
    %v335 = vrot.slane %v110, %v334
    %v337 = vunpack.c.l.s4 1983009808
    %v338 = vunpack.c.0.s8 %v337
    %v339 = vlaneseq
    %v340 = vshrl.u32 %v339, 7
    %v341 = vsub.s32 %v338, %v340
    %v342 = vrot.slane %v328, %v341
    %v343 = vcombine.high %v129, 0.0
    %v345 = vunpack.c.l.s4 1983009808
    %v346 = vunpack.c.0.s8 %v345
    %v347 = vlaneseq
    %v348 = vshrl.u32 %v347, 7
    %v349 = vsub.s32 %v346, %v348
    %v350 = vrot.slane %v129, %v349
    %v352 = vunpack.c.l.s4 1983009808
    %v353 = vunpack.c.0.s8 %v352
    %v354 = vlaneseq
    %v355 = vshrl.u32 %v354, 7
    %v356 = vsub.s32 %v353, %v355
    %v357 = vrot.slane %v343, %v356
    %v358 = vcombine.low %v335, %v350
    %v359 = vcombine.high %v335, %v350
    %v361 = vunpack.c.l.s4 1934713408
    %v362 = vunpack.c.0.s8 %v361
    %v363 = vlaneseq
    %v364 = vshrl.u32 %v363, 7
    %v365 = vsub.s32 %v362, %v364
    %v366 = vrot.slane %v358, %v365
    %v368 = vunpack.c.l.s4 1934713408
    %v369 = vunpack.c.0.s8 %v368
    %v370 = vlaneseq
    %v371 = vshrl.u32 %v370, 7
    %v372 = vsub.s32 %v369, %v371
    %v373 = vrot.slane %v359, %v372
    %v374 = vcombine.low %v342, %v357
    %v375 = vcombine.high %v342, %v357
    %v377 = vunpack.c.l.s4 1934713408
    %v378 = vunpack.c.0.s8 %v377
    %v379 = vlaneseq
    %v380 = vshrl.u32 %v379, 7
    %v381 = vsub.s32 %v378, %v380
    %v382 = vrot.slane %v374, %v381
    %v384 = vunpack.c.l.s4 1934713408
    %v385 = vunpack.c.0.s8 %v384
    %v386 = vlaneseq
    %v387 = vshrl.u32 %v386, 7
    %v388 = vsub.s32 %v385, %v387
    %v389 = vrot.slane %v375, %v388
    %v390 = vcombine.high %v366, 0.0
    %v391 = vcombine.high %v373, 0.0
    %v392 = vcombine.high %v382, 0.0
    %v393 = vcombine.high %v389, 0.0
    %395 = vrot.lane.b32.xlu0 %v192, 32
    %v396 = vpop.permute.xlu0 %395
    %399 = vrot.lane.b32.xlu0 %v175, 64
    %v400 = vpop.permute.xlu0 %399
    %403 = vrot.lane.b32.xlu0 %v193, 96
    %v404 = vpop.permute.xlu0 %403
    %407 = vrot.lane.b32.xlu0 %v194, 32
    %v408 = vpop.permute.xlu0 %407
    %411 = vrot.lane.b32.xlu0 %v191, 64
    %v412 = vpop.permute.xlu0 %411
    %415 = vrot.lane.b32.xlu0 %v195, 96
    %v416 = vpop.permute.xlu0 %415
    %419 = vrot.lane.b32.xlu0 %v258, 32
    %v420 = vpop.permute.xlu0 %419
    %423 = vrot.lane.b32.xlu0 %v241, 64
    %v424 = vpop.permute.xlu0 %423
    %427 = vrot.lane.b32.xlu0 %v259, 96
    %v428 = vpop.permute.xlu0 %427
    %431 = vrot.lane.b32.xlu0 %v260, 32
    %v432 = vpop.permute.xlu0 %431
    %435 = vrot.lane.b32.xlu0 %v257, 64
    %v436 = vpop.permute.xlu0 %435
    %439 = vrot.lane.b32.xlu0 %v261, 96
    %v440 = vpop.permute.xlu0 %439
    %443 = vrot.lane.b32.xlu0 %v324, 32
    %v444 = vpop.permute.xlu0 %443
    %447 = vrot.lane.b32.xlu0 %v307, 64
    %v448 = vpop.permute.xlu0 %447
    %451 = vrot.lane.b32.xlu0 %v325, 96
    %v452 = vpop.permute.xlu0 %451
    %455 = vrot.lane.b32.xlu0 %v326, 32
    %v456 = vpop.permute.xlu0 %455
    %459 = vrot.lane.b32.xlu0 %v323, 64
    %v460 = vpop.permute.xlu0 %459
    %463 = vrot.lane.b32.xlu0 %v327, 96
    %v464 = vpop.permute.xlu0 %463
    %467 = vrot.lane.b32.xlu0 %v390, 32
    %v468 = vpop.permute.xlu0 %467
    %471 = vrot.lane.b32.xlu0 %v373, 64
    %v472 = vpop.permute.xlu0 %471
    %475 = vrot.lane.b32.xlu0 %v391, 96
    %v476 = vpop.permute.xlu0 %475
    %479 = vrot.lane.b32.xlu0 %v392, 32
    %v480 = vpop.permute.xlu0 %479
    %483 = vrot.lane.b32.xlu0 %v389, 64
    %v484 = vpop.permute.xlu0 %483
    %487 = vrot.lane.b32.xlu0 %v393, 96
    %v488 = vpop.permute.xlu0 %487
    %vm490 = vcmask 261120
    %v491 = vsel %vm490, %v168, %v396
    %vm492 = vcmask 523264
    %v493 = vsel %vm492, %v491, %v400
    %vm494 = vcmask 785408
    %v495 = vsel %vm494, %v493, %v404
    %v496 = vsel %vm490, %v184, %v408
    %v497 = vsel %vm492, %v496, %v412
    %v498 = vsel %vm494, %v497, %v416
    %v499 = vsel %vm490, %v234, %v420
    %v500 = vsel %vm492, %v499, %v424
    %v501 = vsel %vm494, %v500, %v428
    %v502 = vsel %vm490, %v250, %v432
    %v503 = vsel %vm492, %v502, %v436
    %v504 = vsel %vm494, %v503, %v440
    %v505 = vsel %vm490, %v300, %v444
    %v506 = vsel %vm492, %v505, %v448
    %v507 = vsel %vm494, %v506, %v452
    %v508 = vsel %vm490, %v316, %v456
    %v509 = vsel %vm492, %v508, %v460
    %v510 = vsel %vm494, %v509, %v464
    %v511 = vsel %vm490, %v366, %v468
    %v512 = vsel %vm492, %v511, %v472
    %v513 = vsel %vm494, %v512, %v476
    %v514 = vsel %vm490, %v382, %v480
    %v515 = vsel %vm492, %v514, %v484
    %v516 = vsel %vm494, %v515, %v488
    %518 = vrot.lane.b32.xlu0 %v91, 96
    %v519 = vpop.permute.xlu0 %518
    %521 = vrot.lane.b32.xlu0 %v91, 32
    %v522 = vpop.permute.xlu0 %521
    %524 = vrot.lane.b32.xlu0 %v91, 64
    %v525 = vpop.permute.xlu0 %524
    %v527 = vsel %vm490, %v519, %v91
    %v528 = vsel %vm492, %v527, %v522
    %v529 = vsel %vm494, %v528, %v525
    %v530 = vmul.f32 %v495, %v529
    %v531 = vmul.f32 %v498, %v529
    %v532 = vmul.f32 %v501, %v529
    %v533 = vmul.f32 %v504, %v529
    %v534 = vmul.f32 %v507, %v529
    %v535 = vmul.f32 %v510, %v529
    %v536 = vmul.f32 %v513, %v529
    %v537 = vmul.f32 %v516, %v529
    %v538 = vpack.c.bf16 %v530, %v530
    %v539 = vpack.c.bf16 %v531, %v531
    %v540 = vpack.c.bf16 %v532, %v532
    %v541 = vpack.c.bf16 %v533, %v533
    %v542 = vpack.c.bf16 %v534, %v534
    %v543 = vpack.c.bf16 %v535, %v535
    %v544 = vpack.c.bf16 %v536, %v536
    %v545 = vpack.c.bf16 %v537, %v537
    %v546 = vpack.c.bf16 %v91, %v91
    %v547 = vld [vmem:[%s5] sm:$0x1]
    %v548 = vld [vmem:[#allocation5] sm:$0xf]
    %v549 = vld [vmem:[#allocation5 + $0x4] sm:$0xf]
    %v550 = vld [vmem:[#allocation5 + $0x8] sm:$0xf]
    %v551 = vld [vmem:[#allocation5 + $0xc] sm:$0xf]
    %v552 = vld [vmem:[#allocation5 + $0x10] sm:$0xf]
    %v553 = vld [vmem:[#allocation5 + $0x14] sm:$0xf]
    %v554 = vld [vmem:[#allocation5 + $0x18] sm:$0xf]
    %v555 = vld [vmem:[#allocation5 + $0x1c] sm:$0xf]
    %v556 = vld [vmem:[#allocation5 + $0x20] sm:$0xf]
    %v557 = vld [vmem:[#allocation5 + $0x24] sm:$0xf]
    %v558 = vld [vmem:[#allocation5 + $0x28] sm:$0xf]
    %v559 = vld [vmem:[#allocation5 + $0x2c] sm:$0xf]
    %v560 = vld [vmem:[#allocation5 + $0x30] sm:$0xf]
    %v561 = vld [vmem:[#allocation5 + $0x34] sm:$0xf]
    %v562 = vld [vmem:[#allocation5 + $0x38] sm:$0xf]
    %v563 = vld [vmem:[#allocation5 + $0x3c] sm:$0xf]
    %v564 = vld [vmem:[#allocation5 + $0x40] sm:$0xf]
    %v565 = vld [vmem:[#allocation5 + $0x44] sm:$0xf]
    %v566 = vld [vmem:[#allocation5 + $0x48] sm:$0xf]
    %v567 = vld [vmem:[#allocation5 + $0x4c] sm:$0xf]
    %v568 = vld [vmem:[#allocation5 + $0x50] sm:$0xf]
    %v569 = vld [vmem:[#allocation5 + $0x54] sm:$0xf]
    %v570 = vld [vmem:[#allocation5 + $0x58] sm:$0xf]
    %v571 = vld [vmem:[#allocation5 + $0x5c] sm:$0xf]
    %v572 = vld [vmem:[#allocation5 + $0x60] sm:$0xf]
    %v573 = vld [vmem:[#allocation5 + $0x64] sm:$0xf]
    %v574 = vld [vmem:[#allocation5 + $0x68] sm:$0xf]
    %v575 = vld [vmem:[#allocation5 + $0x6c] sm:$0xf]
    %v576 = vld [vmem:[#allocation5 + $0x70] sm:$0xf]
    %v577 = vld [vmem:[#allocation5 + $0x74] sm:$0xf]
    %v578 = vld [vmem:[#allocation5 + $0x78] sm:$0xf]
    %v579 = vld [vmem:[#allocation5 + $0x7c] sm:$0xf]
    %v580 = vld [vmem:[#allocation5 + $0x80] sm:$0xf]
    %v581 = vld [vmem:[#allocation5 + $0x84] sm:$0xf]
    %v582 = vld [vmem:[#allocation5 + $0x88] sm:$0xf]
    %v583 = vld [vmem:[#allocation5 + $0x8c] sm:$0xf]
    %v584 = vld [vmem:[#allocation5 + $0x90] sm:$0xf]
    %v585 = vld [vmem:[#allocation5 + $0x94] sm:$0xf]
    %v586 = vld [vmem:[#allocation5 + $0x98] sm:$0xf]
    %v587 = vld [vmem:[#allocation5 + $0x9c] sm:$0xf]
    %v588 = vld [vmem:[#allocation5 + $0xa0] sm:$0xf]
    %v589 = vld [vmem:[#allocation5 + $0xa4] sm:$0xf]
    %v590 = vld [vmem:[#allocation5 + $0xa8] sm:$0xf]
    %v591 = vld [vmem:[#allocation5 + $0xac] sm:$0xf]
    %v592 = vld [vmem:[#allocation5 + $0xb0] sm:$0xf]
    %v593 = vld [vmem:[#allocation5 + $0xb4] sm:$0xf]
    %v594 = vld [vmem:[#allocation5 + $0xb8] sm:$0xf]
    %v595 = vld [vmem:[#allocation5 + $0xbc] sm:$0xf]
    %v596 = vld [vmem:[#allocation5 + $0xc0] sm:$0xf]
    %v597 = vld [vmem:[#allocation5 + $0xc4] sm:$0xf]
    %v598 = vld [vmem:[#allocation5 + $0xc8] sm:$0xf]
    %v599 = vld [vmem:[#allocation5 + $0xcc] sm:$0xf]
    %v600 = vld [vmem:[#allocation5 + $0xd0] sm:$0xf]
    %v601 = vld [vmem:[#allocation5 + $0xd4] sm:$0xf]
    %v602 = vld [vmem:[#allocation5 + $0xd8] sm:$0xf]
    %v603 = vld [vmem:[#allocation5 + $0xdc] sm:$0xf]
    %v604 = vld [vmem:[#allocation5 + $0xe0] sm:$0xf]
    %v605 = vld [vmem:[#allocation5 + $0xe4] sm:$0xf]
    %v606 = vld [vmem:[#allocation5 + $0xe8] sm:$0xf]
    %v607 = vld [vmem:[#allocation5 + $0xec] sm:$0xf]
    %v608 = vld [vmem:[#allocation5 + $0xf0] sm:$0xf]
    %v609 = vld [vmem:[#allocation5 + $0xf4] sm:$0xf]
    %v610 = vld [vmem:[#allocation5 + $0xf8] sm:$0xf]
    %v611 = vld [vmem:[#allocation5 + $0xfc] sm:$0xf]
    %v612 = vld [vmem:[#allocation5 + $0x100] sm:$0xf]
    %v613 = vld [vmem:[#allocation5 + $0x104] sm:$0xf]
    %v614 = vld [vmem:[#allocation5 + $0x108] sm:$0xf]
    %v615 = vld [vmem:[#allocation5 + $0x10c] sm:$0xf]
    %v616 = vld [vmem:[#allocation5 + $0x110] sm:$0xf]
    %v617 = vld [vmem:[#allocation5 + $0x114] sm:$0xf]
    %v618 = vld [vmem:[#allocation5 + $0x118] sm:$0xf]
    %v619 = vld [vmem:[#allocation5 + $0x11c] sm:$0xf]
    %v620 = vld [vmem:[#allocation5 + $0x120] sm:$0xf]
    %v621 = vld [vmem:[#allocation5 + $0x124] sm:$0xf]
    %v622 = vld [vmem:[#allocation5 + $0x128] sm:$0xf]
    %v623 = vld [vmem:[#allocation5 + $0x12c] sm:$0xf]
    %v624 = vld [vmem:[#allocation5 + $0x130] sm:$0xf]
    %v625 = vld [vmem:[#allocation5 + $0x134] sm:$0xf]
    %v626 = vld [vmem:[#allocation5 + $0x138] sm:$0xf]
    %v627 = vld [vmem:[#allocation5 + $0x13c] sm:$0xf]
    %v628 = vld [vmem:[#allocation5 + $0x140] sm:$0xf]
    %v629 = vld [vmem:[#allocation5 + $0x144] sm:$0xf]
    %v630 = vld [vmem:[#allocation5 + $0x148] sm:$0xf]
    %v631 = vld [vmem:[#allocation5 + $0x14c] sm:$0xf]
    %v632 = vld [vmem:[#allocation5 + $0x150] sm:$0xf]
    %v633 = vld [vmem:[#allocation5 + $0x154] sm:$0xf]
    %v634 = vld [vmem:[#allocation5 + $0x158] sm:$0xf]
    %v635 = vld [vmem:[#allocation5 + $0x15c] sm:$0xf]
    %v636 = vld [vmem:[#allocation5 + $0x160] sm:$0xf]
    %v637 = vld [vmem:[#allocation5 + $0x164] sm:$0xf]
    %v638 = vld [vmem:[#allocation5 + $0x168] sm:$0xf]
    %v639 = vld [vmem:[#allocation5 + $0x16c] sm:$0xf]
    %v640 = vld [vmem:[#allocation5 + $0x170] sm:$0xf]
    %v641 = vld [vmem:[#allocation5 + $0x174] sm:$0xf]
    %v642 = vld [vmem:[#allocation5 + $0x178] sm:$0xf]
    %v643 = vld [vmem:[#allocation5 + $0x17c] sm:$0xf]
    %v644 = vld [vmem:[#allocation5 + $0x180] sm:$0xf]
    %v645 = vld [vmem:[#allocation5 + $0x184] sm:$0xf]
    %v646 = vld [vmem:[#allocation5 + $0x188] sm:$0xf]
    %v647 = vld [vmem:[#allocation5 + $0x18c] sm:$0xf]
    %v648 = vld [vmem:[#allocation5 + $0x190] sm:$0xf]
    %v649 = vld [vmem:[#allocation5 + $0x194] sm:$0xf]
    %v650 = vld [vmem:[#allocation5 + $0x198] sm:$0xf]
    %v651 = vld [vmem:[#allocation5 + $0x19c] sm:$0xf]
    %v652 = vld [vmem:[#allocation5 + $0x1a0] sm:$0xf]
    %v653 = vld [vmem:[#allocation5 + $0x1a4] sm:$0xf]
    %v654 = vld [vmem:[#allocation5 + $0x1a8] sm:$0xf]
    %v655 = vld [vmem:[#allocation5 + $0x1ac] sm:$0xf]
    %v656 = vld [vmem:[#allocation5 + $0x1b0] sm:$0xf]
    %v657 = vld [vmem:[#allocation5 + $0x1b4] sm:$0xf]
    %v658 = vld [vmem:[#allocation5 + $0x1b8] sm:$0xf]
    %v659 = vld [vmem:[#allocation5 + $0x1bc] sm:$0xf]
    %v660 = vld [vmem:[#allocation5 + $0x1c0] sm:$0xf]
    %v661 = vld [vmem:[#allocation5 + $0x1c4] sm:$0xf]
    %v662 = vld [vmem:[#allocation5 + $0x1c8] sm:$0xf]
    %v663 = vld [vmem:[#allocation5 + $0x1cc] sm:$0xf]
    %v664 = vld [vmem:[#allocation5 + $0x1d0] sm:$0xf]
    %v665 = vld [vmem:[#allocation5 + $0x1d4] sm:$0xf]
    %v666 = vld [vmem:[#allocation5 + $0x1d8] sm:$0xf]
    %v667 = vld [vmem:[#allocation5 + $0x1dc] sm:$0xf]
    %v668 = vld [vmem:[#allocation5 + $0x1e0] sm:$0xf]
    %v669 = vld [vmem:[#allocation5 + $0x1e4] sm:$0xf]
    %v670 = vld [vmem:[#allocation5 + $0x1e8] sm:$0xf]
    %v671 = vld [vmem:[#allocation5 + $0x1ec] sm:$0xf]
    %v672 = vld [vmem:[#allocation5 + $0x1f0] sm:$0xf]
    %v673 = vld [vmem:[#allocation5 + $0x1f4] sm:$0xf]
    %v674 = vld [vmem:[#allocation5 + $0x1f8] sm:$0xf]
    %v675 = vld [vmem:[#allocation5 + $0x1fc] sm:$0xf]
    %v676 = vld [vmem:[#allocation5 + $0x200] sm:$0xf]
    %v677 = vld [vmem:[#allocation5 + $0x204] sm:$0xf]
    %v678 = vld [vmem:[#allocation5 + $0x208] sm:$0xf]
    %v679 = vld [vmem:[#allocation5 + $0x20c] sm:$0xf]
    %v680 = vld [vmem:[#allocation5 + $0x210] sm:$0xf]
    %v681 = vld [vmem:[#allocation5 + $0x214] sm:$0xf]
    %v682 = vld [vmem:[#allocation5 + $0x218] sm:$0xf]
    %v683 = vld [vmem:[#allocation5 + $0x21c] sm:$0xf]
    %v685 = vlaneseq
    %v686 = vshrl.u32 %v685, 7
    %v687 = vsub.s32 0, %v686
    %v688 = vrot.slane %v547, %v687
    %v826 = vunpack.c.l.b16 %v548
    %v827 = vunpack.c.l.b16 %v549
    %v828 = vunpack.c.l.b16 %v550
    %v829 = vunpack.c.l.b16 %v551
    %v830 = vunpack.c.l.b16 %v552
    %v831 = vunpack.c.l.b16 %v553
    %v832 = vunpack.c.l.b16 %v554
    %v833 = vunpack.c.l.b16 %v555
    %v834 = vunpack.c.l.b16 %v556
    %v835 = vunpack.c.l.b16 %v557
    %v836 = vunpack.c.l.b16 %v558
    %v837 = vunpack.c.l.b16 %v559
    %v838 = vunpack.c.l.b16 %v560
    %v839 = vunpack.c.l.b16 %v561
    %v840 = vunpack.c.l.b16 %v562
    %v841 = vunpack.c.l.b16 %v563
    %v842 = vunpack.c.l.b16 %v564
    %v843 = vunpack.c.l.b16 %v565
    %v844 = vunpack.c.l.b16 %v566
    %v845 = vunpack.c.l.b16 %v567
    %v846 = vunpack.c.l.b16 %v568
    %v847 = vunpack.c.l.b16 %v569
    %v848 = vunpack.c.l.b16 %v570
    %v849 = vunpack.c.l.b16 %v571
    %v850 = vunpack.c.l.b16 %v572
    %v851 = vunpack.c.l.b16 %v573
    %v852 = vunpack.c.l.b16 %v574
    %v853 = vunpack.c.l.b16 %v575
    %v854 = vunpack.c.l.b16 %v576
    %v855 = vunpack.c.l.b16 %v577
    %v856 = vunpack.c.l.b16 %v578
    %v857 = vunpack.c.l.b16 %v579
    %v858 = vunpack.c.l.b16 %v580
    %v859 = vunpack.c.l.b16 %v581
    %v860 = vunpack.c.l.b16 %v582
    %v861 = vunpack.c.l.b16 %v583
    %v862 = vunpack.c.l.b16 %v584
    %v863 = vunpack.c.l.b16 %v585
    %v864 = vunpack.c.l.b16 %v586
    %v865 = vunpack.c.l.b16 %v587
    %v866 = vunpack.c.l.b16 %v588
    %v867 = vunpack.c.l.b16 %v589
    %v868 = vunpack.c.l.b16 %v590
    %v869 = vunpack.c.l.b16 %v591
    %v870 = vunpack.c.l.b16 %v592
    %v871 = vunpack.c.l.b16 %v593
    %v872 = vunpack.c.l.b16 %v594
    %v873 = vunpack.c.l.b16 %v595
    %v874 = vunpack.c.l.b16 %v596
    %v875 = vunpack.c.l.b16 %v597
    %v876 = vunpack.c.l.b16 %v598
    %v877 = vunpack.c.l.b16 %v599
    %v878 = vunpack.c.l.b16 %v600
    %v879 = vunpack.c.l.b16 %v601
    %v880 = vunpack.c.l.b16 %v602
    %v881 = vunpack.c.l.b16 %v603
    %v882 = vunpack.c.l.b16 %v604
    %v883 = vunpack.c.l.b16 %v605
    %v884 = vunpack.c.l.b16 %v606
    %v885 = vunpack.c.l.b16 %v607
    %v886 = vunpack.c.l.b16 %v608
    %v887 = vunpack.c.l.b16 %v609
    %v888 = vunpack.c.l.b16 %v610
    %v889 = vunpack.c.l.b16 %v611
    %v890 = vunpack.c.l.b16 %v612
    %v891 = vunpack.c.l.b16 %v613
    %v892 = vunpack.c.l.b16 %v614
    %v893 = vunpack.c.l.b16 %v615
    %v894 = vunpack.c.l.b16 %v616
    %v895 = vunpack.c.l.b16 %v617
    %v896 = vunpack.c.l.b16 %v618
    %v897 = vunpack.c.l.b16 %v619
    %v898 = vunpack.c.l.b16 %v620
    %v899 = vunpack.c.l.b16 %v621
    %v900 = vunpack.c.l.b16 %v622
    %v901 = vunpack.c.l.b16 %v623
    %v902 = vunpack.c.l.b16 %v624
    %v903 = vunpack.c.l.b16 %v625
    %v904 = vunpack.c.l.b16 %v626
    %v905 = vunpack.c.l.b16 %v627
    %v906 = vunpack.c.l.b16 %v628
    %v907 = vunpack.c.l.b16 %v629
    %v908 = vunpack.c.l.b16 %v630
    %v909 = vunpack.c.l.b16 %v631
    %v910 = vunpack.c.l.b16 %v632
    %v911 = vunpack.c.l.b16 %v633
    %v912 = vunpack.c.l.b16 %v634
    %v913 = vunpack.c.l.b16 %v635
    %v914 = vunpack.c.l.b16 %v636
    %v915 = vunpack.c.l.b16 %v637
    %v916 = vunpack.c.l.b16 %v638
    %v917 = vunpack.c.l.b16 %v639
    %v918 = vunpack.c.l.b16 %v640
    %v919 = vunpack.c.l.b16 %v641
    %v920 = vunpack.c.l.b16 %v642
    %v921 = vunpack.c.l.b16 %v643
    %v922 = vunpack.c.l.b16 %v644
    %v923 = vunpack.c.l.b16 %v645
    %v924 = vunpack.c.l.b16 %v646
    %v925 = vunpack.c.l.b16 %v647
    %v926 = vunpack.c.l.b16 %v648
    %v927 = vunpack.c.l.b16 %v649
    %v928 = vunpack.c.l.b16 %v650
    %v929 = vunpack.c.l.b16 %v651
    %v930 = vunpack.c.l.b16 %v652
    %v931 = vunpack.c.l.b16 %v653
    %v932 = vunpack.c.l.b16 %v654
    %v933 = vunpack.c.l.b16 %v655
    %v934 = vunpack.c.l.b16 %v656
    %v935 = vunpack.c.l.b16 %v657
    %v936 = vunpack.c.l.b16 %v658
    %v937 = vunpack.c.l.b16 %v659
    %v938 = vunpack.c.l.b16 %v660
    %v939 = vunpack.c.l.b16 %v661
    %v940 = vunpack.c.l.b16 %v662
    %v941 = vunpack.c.l.b16 %v663
    %v942 = vunpack.c.l.b16 %v664
    %v943 = vunpack.c.l.b16 %v665
    %v944 = vunpack.c.l.b16 %v666
    %v945 = vunpack.c.l.b16 %v667
    %v946 = vunpack.c.l.b16 %v668
    %v947 = vunpack.c.l.b16 %v669
    %v948 = vunpack.c.l.b16 %v670
    %v949 = vunpack.c.l.b16 %v671
    %v950 = vunpack.c.l.b16 %v672
    %v951 = vunpack.c.l.b16 %v673
    %v952 = vunpack.c.l.b16 %v674
    %v953 = vunpack.c.l.b16 %v675
    %v954 = vunpack.c.l.b16 %v676
    %v955 = vunpack.c.l.b16 %v677
    %v956 = vunpack.c.l.b16 %v678
    %v957 = vunpack.c.l.b16 %v679
    %v958 = vunpack.c.l.b16 %v680
    %v959 = vunpack.c.l.b16 %v681
    %v960 = vunpack.c.l.b16 %v682
    %v961 = vunpack.c.l.b16 %v683
    %v962 = vpack.c.b16 %v827, %v826
    %v963 = vpack.c.b16 %v829, %v828
    %v964 = vpack.c.b16 %v831, %v830
    %v965 = vpack.c.b16 %v833, %v832
    %v966 = vpack.c.b16 %v835, %v834
    %v967 = vpack.c.b16 %v837, %v836
    %v968 = vpack.c.b16 %v839, %v838
    %v969 = vpack.c.b16 %v841, %v840
    %v970 = vpack.c.b16 %v843, %v842
    %v971 = vpack.c.b16 %v845, %v844
    %v972 = vpack.c.b16 %v847, %v846
    %v973 = vpack.c.b16 %v849, %v848
    %v974 = vpack.c.b16 %v851, %v850
    %v975 = vpack.c.b16 %v853, %v852
    %v976 = vpack.c.b16 %v855, %v854
    %v977 = vpack.c.b16 %v857, %v856
    %v978 = vpack.c.b16 %v859, %v858
    %v979 = vpack.c.b16 %v861, %v860
    %v980 = vpack.c.b16 %v863, %v862
    %v981 = vpack.c.b16 %v865, %v864
    %v982 = vpack.c.b16 %v867, %v866
    %v983 = vpack.c.b16 %v869, %v868
    %v984 = vpack.c.b16 %v871, %v870
    %v985 = vpack.c.b16 %v873, %v872
    %v986 = vpack.c.b16 %v875, %v874
    %v987 = vpack.c.b16 %v877, %v876
    %v988 = vpack.c.b16 %v879, %v878
    %v989 = vpack.c.b16 %v881, %v880
    %v990 = vpack.c.b16 %v883, %v882
    %v991 = vpack.c.b16 %v885, %v884
    %v992 = vpack.c.b16 %v887, %v886
    %v993 = vpack.c.b16 %v889, %v888
    %v994 = vpack.c.b16 %v891, %v890
    %v995 = vpack.c.b16 %v893, %v892
    %v996 = vpack.c.b16 %v895, %v894
    %v997 = vpack.c.b16 %v897, %v896
    %v998 = vpack.c.b16 %v899, %v898
    %v999 = vpack.c.b16 %v901, %v900
    %v1000 = vpack.c.b16 %v903, %v902
    %v1001 = vpack.c.b16 %v905, %v904
    %v1002 = vpack.c.b16 %v907, %v906
    %v1003 = vpack.c.b16 %v909, %v908
    %v1004 = vpack.c.b16 %v911, %v910
    %v1005 = vpack.c.b16 %v913, %v912
    %v1006 = vpack.c.b16 %v915, %v914
    %v1007 = vpack.c.b16 %v917, %v916
    %v1008 = vpack.c.b16 %v919, %v918
    %v1009 = vpack.c.b16 %v921, %v920
    %v1010 = vpack.c.b16 %v923, %v922
    %v1011 = vpack.c.b16 %v925, %v924
    %v1012 = vpack.c.b16 %v927, %v926
    %v1013 = vpack.c.b16 %v929, %v928
    %v1014 = vpack.c.b16 %v931, %v930
    %v1015 = vpack.c.b16 %v933, %v932
    %v1016 = vpack.c.b16 %v935, %v934
    %v1017 = vpack.c.b16 %v937, %v936
    %v1018 = vpack.c.b16 %v939, %v938
    %v1019 = vpack.c.b16 %v941, %v940
    %v1020 = vpack.c.b16 %v943, %v942
    %v1021 = vpack.c.b16 %v945, %v944
    %v1022 = vpack.c.b16 %v947, %v946
    %v1023 = vpack.c.b16 %v949, %v948
    %v1024 = vpack.c.b16 %v951, %v950
    %v1025 = vpack.c.b16 %v953, %v952
    %v1026 = vpack.c.b16 %v955, %v954
    %v1027 = vpack.c.b16 %v957, %v956
    %v1028 = vpack.c.b16 %v959, %v958
    %v1029 = vpack.c.b16 %v961, %v960
    %v1099 = vsel %vm492, %v546, 0
    %1101 = vmatprep.subr.bf16.mxu0 0
    %1102 = vmatpush1.bf16.msra.mxu0 %v962
    %1103 = vmatprep.subr.bf16.mxu0 0
    %1104 = vmatpush1.bf16.msra.mxu0 %v963
    %1105 = vmatprep.subr.bf16.mxu0 0
    %1106 = vmatpush1.bf16.msra.mxu0 %v964
    %1107 = vmatprep.subr.bf16.mxu0 0
    %1108 = vmatpush1.bf16.msra.mxu0 %v965
    %1109 = vmatprep.subr.bf16.mxu0 0
    %1110 = vmatpush1.bf16.msra.mxu0 %v966
    %1111 = vmatprep.subr.bf16.mxu0 0
    %1112 = vmatpush1.bf16.msra.mxu0 %v967
    %1113 = vmatprep.subr.bf16.mxu0 0
    %1114 = vmatpush1.bf16.msra.mxu0 %v968
    %1115 = vmatprep.subr.bf16.mxu0 0
    %1116 = vmatpush1.bf16.msra.mxu0 %v969
    %1117 = vmatprep.subr.bf16.mxu0 0
    %1118 = vmatpush1.bf16.msra.mxu0 %v970
    %1119 = vmatprep.subr.bf16.mxu0 0
    %1120 = vmatpush1.bf16.msra.mxu0 %v971
    %1121 = vmatprep.subr.bf16.mxu0 0
    %1122 = vmatpush1.bf16.msra.mxu0 %v972
    %1123 = vmatprep.subr.bf16.mxu0 0
    %1124 = vmatpush1.bf16.msra.mxu0 %v973
    %1125 = vmatprep.subr.bf16.mxu0 0
    %1126 = vmatpush1.bf16.msra.mxu0 %v974
    %1127 = vmatprep.subr.bf16.mxu0 0
    %1128 = vmatpush1.bf16.msra.mxu0 %v975
    %1129 = vmatprep.subr.bf16.mxu0 0
    %1130 = vmatpush1.bf16.msra.mxu0 %v976
    %1131 = vmatprep.subr.bf16.mxu0 0
    %1132 = vmatpush1.bf16.msra.mxu0 %v977
    %1133 = vmatprep.mubr.bf16.mxu0 %v539
    %1134 = vmatmul.mubr.bf16.gmra.mrb[0].mxu0 %v538
    %v1135 = vpop.f32.mrb[0].mxu0
    %v1136 = vadd.f32 %v688, %v1135
    %v1137 = vpop.f32.mrb[0].mxu0
    %v1138 = vpop.f32.mrb[0].mxu0
    %v1139 = vpop.f32.mrb[0].mxu0
    %1140 = vdwg.mxu0
    %1141 = vmatprep.subr.bf16.mxu0 0
    %1142 = vmatpush1.bf16.msra.mxu0 %v978
    %1143 = vmatprep.subr.bf16.mxu0 0
    %1144 = vmatpush1.bf16.msra.mxu0 %v979
    %1145 = vmatprep.subr.bf16.mxu0 0
    %1146 = vmatpush1.bf16.msra.mxu0 %v980
    %1147 = vmatprep.subr.bf16.mxu0 0
    %1148 = vmatpush1.bf16.msra.mxu0 %v981
    %1149 = vmatprep.subr.bf16.mxu0 0
    %1150 = vmatpush1.bf16.msra.mxu0 %v982
    %1151 = vmatprep.subr.bf16.mxu0 0
    %1152 = vmatpush1.bf16.msra.mxu0 %v983
    %1153 = vmatprep.subr.bf16.mxu0 0
    %1154 = vmatpush1.bf16.msra.mxu0 %v984
    %1155 = vmatprep.subr.bf16.mxu0 0
    %1156 = vmatpush1.bf16.msra.mxu0 %v985
    %1157 = vmatprep.subr.bf16.mxu0 0
    %1158 = vmatpush1.bf16.msra.mxu0 %v986
    %1159 = vmatprep.subr.bf16.mxu0 0
    %1160 = vmatpush1.bf16.msra.mxu0 %v987
    %1161 = vmatprep.subr.bf16.mxu0 0
    %1162 = vmatpush1.bf16.msra.mxu0 %v988
    %1163 = vmatprep.subr.bf16.mxu0 0
    %1164 = vmatpush1.bf16.msra.mxu0 %v989
    %1165 = vmatprep.subr.bf16.mxu0 0
    %1166 = vmatpush1.bf16.msra.mxu0 %v990
    %1167 = vmatprep.subr.bf16.mxu0 0
    %1168 = vmatpush1.bf16.msra.mxu0 %v991
    %1169 = vmatprep.subr.bf16.mxu0 0
    %1170 = vmatpush1.bf16.msra.mxu0 %v992
    %1171 = vmatprep.subr.bf16.mxu0 0
    %1172 = vmatpush1.bf16.msra.mxu0 %v993
    %1173 = vmatprep.mubr.bf16.mxu0 %v541
    %1174 = vmatmul.mubr.bf16.gmra.mrb[0].mxu0 %v540
    %v1175 = vpop.f32.mrb[0].mxu0
    %v1176 = vadd.f32 %v1136, %v1175
    %v1177 = vpop.f32.mrb[0].mxu0
    %v1178 = vpop.f32.mrb[0].mxu0
    %v1179 = vpop.f32.mrb[0].mxu0
    %1180 = vdwg.mxu0
    %1181 = vmatprep.subr.bf16.mxu0 0
    %1182 = vmatpush1.bf16.msra.mxu0 %v994
    %1183 = vmatprep.subr.bf16.mxu0 0
    %1184 = vmatpush1.bf16.msra.mxu0 %v995
    %1185 = vmatprep.subr.bf16.mxu0 0
    %1186 = vmatpush1.bf16.msra.mxu0 %v996
    %1187 = vmatprep.subr.bf16.mxu0 0
    %1188 = vmatpush1.bf16.msra.mxu0 %v997
    %1189 = vmatprep.subr.bf16.mxu0 0
    %1190 = vmatpush1.bf16.msra.mxu0 %v998
    %1191 = vmatprep.subr.bf16.mxu0 0
    %1192 = vmatpush1.bf16.msra.mxu0 %v999
    %1193 = vmatprep.subr.bf16.mxu0 0
    %1194 = vmatpush1.bf16.msra.mxu0 %v1000
    %1195 = vmatprep.subr.bf16.mxu0 0
    %1196 = vmatpush1.bf16.msra.mxu0 %v1001
    %1197 = vmatprep.subr.bf16.mxu0 0
    %1198 = vmatpush1.bf16.msra.mxu0 %v1002
    %1199 = vmatprep.subr.bf16.mxu0 0
    %1200 = vmatpush1.bf16.msra.mxu0 %v1003
    %1201 = vmatprep.subr.bf16.mxu0 0
    %1202 = vmatpush1.bf16.msra.mxu0 %v1004
    %1203 = vmatprep.subr.bf16.mxu0 0
    %1204 = vmatpush1.bf16.msra.mxu0 %v1005
    %1205 = vmatprep.subr.bf16.mxu0 0
    %1206 = vmatpush1.bf16.msra.mxu0 %v1006
    %1207 = vmatprep.subr.bf16.mxu0 0
    %1208 = vmatpush1.bf16.msra.mxu0 %v1007
    %1209 = vmatprep.subr.bf16.mxu0 0
    %1210 = vmatpush1.bf16.msra.mxu0 %v1008
    %1211 = vmatprep.subr.bf16.mxu0 0
    %1212 = vmatpush1.bf16.msra.mxu0 %v1009
    %1213 = vmatprep.mubr.bf16.mxu0 %v543
    %1214 = vmatmul.mubr.bf16.gmra.mrb[0].mxu0 %v542
    %v1215 = vpop.f32.mrb[0].mxu0
    %v1216 = vadd.f32 %v1176, %v1215
    %v1217 = vpop.f32.mrb[0].mxu0
    %v1218 = vpop.f32.mrb[0].mxu0
    %v1219 = vpop.f32.mrb[0].mxu0
    %1220 = vdwg.mxu0
    %1221 = vmatprep.subr.bf16.mxu0 0
    %1222 = vmatpush1.bf16.msra.mxu0 %v1010
    %1223 = vmatprep.subr.bf16.mxu0 0
    %1224 = vmatpush1.bf16.msra.mxu0 %v1011
    %1225 = vmatprep.subr.bf16.mxu0 0
    %1226 = vmatpush1.bf16.msra.mxu0 %v1012
    %1227 = vmatprep.subr.bf16.mxu0 0
    %1228 = vmatpush1.bf16.msra.mxu0 %v1013
    %1229 = vmatprep.subr.bf16.mxu0 0
    %1230 = vmatpush1.bf16.msra.mxu0 %v1014
    %1231 = vmatprep.subr.bf16.mxu0 0
    %1232 = vmatpush1.bf16.msra.mxu0 %v1015
    %1233 = vmatprep.subr.bf16.mxu0 0
    %1234 = vmatpush1.bf16.msra.mxu0 %v1016
    %1235 = vmatprep.subr.bf16.mxu0 0
    %1236 = vmatpush1.bf16.msra.mxu0 %v1017
    %1237 = vmatprep.subr.bf16.mxu0 0
    %1238 = vmatpush1.bf16.msra.mxu0 %v1018
    %1239 = vmatprep.subr.bf16.mxu0 0
    %1240 = vmatpush1.bf16.msra.mxu0 %v1019
    %1241 = vmatprep.subr.bf16.mxu0 0
    %1242 = vmatpush1.bf16.msra.mxu0 %v1020
    %1243 = vmatprep.subr.bf16.mxu0 0
    %1244 = vmatpush1.bf16.msra.mxu0 %v1021
    %1245 = vmatprep.subr.bf16.mxu0 0
    %1246 = vmatpush1.bf16.msra.mxu0 %v1022
    %1247 = vmatprep.subr.bf16.mxu0 0
    %1248 = vmatpush1.bf16.msra.mxu0 %v1023
    %1249 = vmatprep.subr.bf16.mxu0 0
    %1250 = vmatpush1.bf16.msra.mxu0 %v1024
    %1251 = vmatprep.subr.bf16.mxu0 0
    %1252 = vmatpush1.bf16.msra.mxu0 %v1025
    %1253 = vmatprep.mubr.bf16.mxu0 %v545
    %1254 = vmatmul.mubr.bf16.gmra.mrb[0].mxu0 %v544
    %v1255 = vpop.f32.mrb[0].mxu0
    %v1256 = vadd.f32 %v1216, %v1255
    %v1257 = vpop.f32.mrb[0].mxu0
    %v1258 = vpop.f32.mrb[0].mxu0
    %v1259 = vpop.f32.mrb[0].mxu0
    %1260 = vdwg.mxu0
    %1261 = vmatprep.subr.bf16.mxu0 0
    %1262 = vmatpush1.bf16.msra.mxu0 %v1026
    %1263 = vmatprep.subr.bf16.mxu0 0
    %1264 = vmatpush1.bf16.msra.mxu0 %v1027
    %1265 = vmatprep.subr.bf16.mxu0 0
    %1266 = vmatpush1.bf16.msra.mxu0 %v1028
    %1267 = vmatprep.subr.bf16.mxu0 0
    %1268 = vmatpush1.bf16.msra.mxu0 %v1029
    %1269 = vmatprep.subr.bf16.mxu0 0
    %1270 = vmatpush1.bf16.msra.mxu0 0
    %1271 = vmatprep.subr.bf16.mxu0 0
    %1272 = vmatpush1.bf16.msra.mxu0 0
    %1273 = vmatprep.subr.bf16.mxu0 0
    %1274 = vmatpush1.bf16.msra.mxu0 0
    %1275 = vmatprep.subr.bf16.mxu0 0
    %1276 = vmatpush1.bf16.msra.mxu0 0
    %1277 = vmatprep.subr.bf16.mxu0 0
    %1278 = vmatpush1.bf16.msra.mxu0 0
    %1279 = vmatprep.subr.bf16.mxu0 0
    %1280 = vmatpush1.bf16.msra.mxu0 0
    %1281 = vmatprep.subr.bf16.mxu0 0
    %1282 = vmatpush1.bf16.msra.mxu0 0
    %1283 = vmatprep.subr.bf16.mxu0 0
    %1284 = vmatpush1.bf16.msra.mxu0 0
    %1285 = vmatprep.subr.bf16.mxu0 0
    %1286 = vmatpush1.bf16.msra.mxu0 0
    %1287 = vmatprep.subr.bf16.mxu0 0
    %1288 = vmatpush1.bf16.msra.mxu0 0
    %1289 = vmatprep.subr.bf16.mxu0 0
    %1290 = vmatpush1.bf16.msra.mxu0 0
    %1291 = vmatprep.subr.bf16.mxu0 0
    %1292 = vmatpush1.bf16.msra.mxu0 0
    %1293 = vmatprep.mubr.bf16.mxu0 0
    %1294 = vmatmul.mubr.bf16.gmra.mrb[0].mxu0 %v1099
    %v1295 = vpop.f32.mrb[0].mxu0
    %v1296 = vadd.f32 %v1256, %v1295
    %v1297 = vpop.f32.mrb[0].mxu0
    %v1298 = vpop.f32.mrb[0].mxu0
    %v1299 = vpop.f32.mrb[0].mxu0
    %1300 = vdwg.mxu0
    %v1301 = vmax.f32 %v1296, 0.0
    %v1302 = vxor.u32 %v1296, 2147483648
    %v1303 = vmul.f32 %v1302, 1.442695
    %v1304 = vpow.pop %v1303
    %v1305 = vadd.f32 %v1304, 1.0
    %v1306 = vrcp.pop %v1305
    %v1307 = vmul.f32 1.0, %v1306
    %1309 = vrot.lane.b32.xlu0 %v1301, 64
    %v1310 = vpop.permute.xlu0 %1309
    %v1312 = vmul.f32 %v1307, %v1310
    %v1313 = vpack.c.bf16 %v1312, %v1312
    %v1314 = vld [vmem:[%s5 + $0x1] sm:$0x1]
    %v1315 = vld [vmem:[#allocation7] sm:$0xf]
    %v1316 = vld [vmem:[#allocation7 + $0x4] sm:$0xf]
    %v1317 = vld [vmem:[#allocation7 + $0x8] sm:$0xf]
    %v1318 = vld [vmem:[#allocation7 + $0xc] sm:$0xf]
    %v1319 = vld [vmem:[#allocation7 + $0x10] sm:$0xf]
    %v1320 = vld [vmem:[#allocation7 + $0x14] sm:$0xf]
    %v1321 = vld [vmem:[#allocation7 + $0x18] sm:$0xf]
    %v1322 = vld [vmem:[#allocation7 + $0x1c] sm:$0xf]
    %v1324 = vlaneseq
    %v1325 = vshrl.u32 %v1324, 7
    %v1326 = vsub.s32 0, %v1325
    %v1327 = vrot.slane %v1314, %v1326
    %1330 = vrot.lane.b32.xlu0 %v1313, 64
    %v1331 = vpop.permute.xlu0 %1330
    %v1340 = vunpack.c.l.b16 %v1315
    %v1341 = vunpack.c.l.b16 %v1316
    %v1342 = vunpack.c.l.b16 %v1317
    %v1343 = vunpack.c.l.b16 %v1318
    %v1344 = vunpack.c.l.b16 %v1319
    %v1345 = vunpack.c.l.b16 %v1320
    %v1346 = vunpack.c.l.b16 %v1321
    %v1347 = vunpack.c.l.b16 %v1322
    %v1348 = vpack.c.b16 %v1341, %v1340
    %v1349 = vpack.c.b16 %v1343, %v1342
    %v1350 = vpack.c.b16 %v1345, %v1344
    %v1351 = vpack.c.b16 %v1347, %v1346
    %v1357 = vsel %vm492, %v1331, 0
    %1359 = vmatprep.subr.bf16.mxu0 0
    %1360 = vmatpush1.bf16.msra.mxu0 %v1348
    %1361 = vmatprep.subr.bf16.mxu0 0
    %1362 = vmatpush1.bf16.msra.mxu0 %v1349
    %1363 = vmatprep.subr.bf16.mxu0 0
    %1364 = vmatpush1.bf16.msra.mxu0 %v1350
    %1365 = vmatprep.subr.bf16.mxu0 0
    %1366 = vmatpush1.bf16.msra.mxu0 %v1351
    %1367 = vmatprep.subr.bf16.mxu0 0
    %1368 = vmatpush1.bf16.msra.mxu0 0
    %1369 = vmatprep.subr.bf16.mxu0 0
    %1370 = vmatpush1.bf16.msra.mxu0 0
    %1371 = vmatprep.subr.bf16.mxu0 0
    %1372 = vmatpush1.bf16.msra.mxu0 0
    %1373 = vmatprep.subr.bf16.mxu0 0
    %1374 = vmatpush1.bf16.msra.mxu0 0
    %1375 = vmatprep.subr.bf16.mxu0 0
    %1376 = vmatpush1.bf16.msra.mxu0 0
    %1377 = vmatprep.subr.bf16.mxu0 0
    %1378 = vmatpush1.bf16.msra.mxu0 0
    %1379 = vmatprep.subr.bf16.mxu0 0
    %1380 = vmatpush1.bf16.msra.mxu0 0
    %1381 = vmatprep.subr.bf16.mxu0 0
    %1382 = vmatpush1.bf16.msra.mxu0 0
    %1383 = vmatprep.subr.bf16.mxu0 0
    %1384 = vmatpush1.bf16.msra.mxu0 0
    %1385 = vmatprep.subr.bf16.mxu0 0
    %1386 = vmatpush1.bf16.msra.mxu0 0
    %1387 = vmatprep.subr.bf16.mxu0 0
    %1388 = vmatpush1.bf16.msra.mxu0 0
    %1389 = vmatprep.subr.bf16.mxu0 0
    %1390 = vmatpush1.bf16.msra.mxu0 0
    %1391 = vmatprep.mubr.bf16.mxu0 0
    %1392 = vmatmul.mubr.bf16.gmra.mrb[0].mxu0 %v1357
    %v1393 = vpop.f32.mrb[0].mxu0
    %v1394 = vadd.f32 %v1327, %v1393
    %v1395 = vpop.f32.mrb[0].mxu0
    %v1396 = vpop.f32.mrb[0].mxu0
    %v1397 = vpop.f32.mrb[0].mxu0
    %1398 = vdwg.mxu0
    %v1399 = vmax.f32 %v1394, 0.0
    %v1400 = vld [vmem:[%s5 + $0x2] sm:$0xff]
    %v1401 = vpack.c.bf16 %v1399, %v1399
    %v1402 = vld [vmem:[#allocation8] sm:$0xff]
    %v1403 = vld [vmem:[#allocation8 + $0x8] sm:$0xff]
    %v1404 = vld [vmem:[#allocation8 + $0x10] sm:$0xff]
    %v1405 = vld [vmem:[#allocation8 + $0x18] sm:$0xff]
    %v1406 = vld [vmem:[#allocation8 + $0x20] sm:$0xff]
    %v1407 = vld [vmem:[#allocation8 + $0x28] sm:$0xff]
    %v1408 = vld [vmem:[#allocation8 + $0x30] sm:$0xff]
    %v1409 = vld [vmem:[#allocation8 + $0x38] sm:$0xff]
    %v1410 = vld [vmem:[#allocation8 + $0x40] sm:$0xff]
    %v1411 = vld [vmem:[#allocation8 + $0x48] sm:$0xff]
    %v1412 = vld [vmem:[#allocation8 + $0x50] sm:$0xff]
    %v1413 = vld [vmem:[#allocation8 + $0x58] sm:$0xff]
    %v1414 = vld [vmem:[#allocation8 + $0x60] sm:$0xff]
    %v1415 = vld [vmem:[#allocation8 + $0x68] sm:$0xff]
    %v1416 = vld [vmem:[#allocation8 + $0x70] sm:$0xff]
    %v1417 = vld [vmem:[#allocation8 + $0x78] sm:$0xff]
    %v1418 = vld [vmem:[#allocation8 + $0x80] sm:$0xff]
    %v1419 = vld [vmem:[#allocation8 + $0x88] sm:$0xff]
    %v1420 = vld [vmem:[#allocation8 + $0x90] sm:$0xff]
    %v1421 = vld [vmem:[#allocation8 + $0x98] sm:$0xff]
    %v1422 = vld [vmem:[#allocation8 + $0xa0] sm:$0xff]
    %v1423 = vld [vmem:[#allocation8 + $0xa8] sm:$0xff]
    %v1424 = vld [vmem:[#allocation8 + $0xb0] sm:$0xff]
    %v1425 = vld [vmem:[#allocation8 + $0xb8] sm:$0xff]
    %v1426 = vld [vmem:[#allocation8 + $0xc0] sm:$0xff]
    %v1427 = vld [vmem:[#allocation8 + $0xc8] sm:$0xff]
    %v1428 = vld [vmem:[#allocation8 + $0xd0] sm:$0xff]
    %v1429 = vld [vmem:[#allocation8 + $0xd8] sm:$0xff]
    %v1430 = vld [vmem:[#allocation8 + $0xe0] sm:$0xff]
    %v1431 = vld [vmem:[#allocation8 + $0xe8] sm:$0xff]
    %v1432 = vld [vmem:[#allocation8 + $0xf0] sm:$0xff]
    %v1433 = vld [vmem:[#allocation8 + $0xf8] sm:$0xff]
    %v1435 = vlaneseq
    %v1436 = vshrl.u32 %v1435, 7
    %v1437 = vsub.s32 0, %v1436
    %v1438 = vrot.slane %v1400, %v1437
    %v1439 = vlaneseq
    %v1440 = vshrl.u32 %v1439, 7
    %v1441 = vsub.s32 1, %v1440
    %v1442 = vrot.slane %v1400, %v1441
    %v1443 = vlaneseq
    %v1444 = vshrl.u32 %v1443, 7
    %v1445 = vsub.s32 2, %v1444
    %v1446 = vrot.slane %v1400, %v1445
    %v1447 = vlaneseq
    %v1448 = vshrl.u32 %v1447, 7
    %v1449 = vsub.s32 3, %v1448
    %v1450 = vrot.slane %v1400, %v1449
    %v1451 = vlaneseq
    %v1452 = vshrl.u32 %v1451, 7
    %v1453 = vsub.s32 4, %v1452
    %v1454 = vrot.slane %v1400, %v1453
    %v1455 = vlaneseq
    %v1456 = vshrl.u32 %v1455, 7
    %v1457 = vsub.s32 5, %v1456
    %v1458 = vrot.slane %v1400, %v1457
    %v1459 = vlaneseq
    %v1460 = vshrl.u32 %v1459, 7
    %v1461 = vsub.s32 6, %v1460
    %v1462 = vrot.slane %v1400, %v1461
    %v1463 = vlaneseq
    %v1464 = vshrl.u32 %v1463, 7
    %v1465 = vsub.s32 7, %v1464
    %v1466 = vrot.slane %v1400, %v1465
    %v1507 = vunpack.c.l.b16 %v1402
    %v1508 = vunpack.c.h.b16 %v1402
    %v1509 = vunpack.c.l.b16 %v1403
    %v1510 = vunpack.c.h.b16 %v1403
    %v1511 = vunpack.c.l.b16 %v1404
    %v1512 = vunpack.c.h.b16 %v1404
    %v1513 = vunpack.c.l.b16 %v1405
    %v1514 = vunpack.c.h.b16 %v1405
    %v1515 = vunpack.c.l.b16 %v1406
    %v1516 = vunpack.c.h.b16 %v1406
    %v1517 = vunpack.c.l.b16 %v1407
    %v1518 = vunpack.c.h.b16 %v1407
    %v1519 = vunpack.c.l.b16 %v1408
    %v1520 = vunpack.c.h.b16 %v1408
    %v1521 = vunpack.c.l.b16 %v1409
    %v1522 = vunpack.c.h.b16 %v1409
    %v1523 = vunpack.c.l.b16 %v1410
    %v1524 = vunpack.c.h.b16 %v1410
    %v1525 = vunpack.c.l.b16 %v1411
    %v1526 = vunpack.c.h.b16 %v1411
    %v1527 = vunpack.c.l.b16 %v1412
    %v1528 = vunpack.c.h.b16 %v1412
    %v1529 = vunpack.c.l.b16 %v1413
    %v1530 = vunpack.c.h.b16 %v1413
    %v1531 = vunpack.c.l.b16 %v1414
    %v1532 = vunpack.c.h.b16 %v1414
    %v1533 = vunpack.c.l.b16 %v1415
    %v1534 = vunpack.c.h.b16 %v1415
    %v1535 = vunpack.c.l.b16 %v1416
    %v1536 = vunpack.c.h.b16 %v1416
    %v1537 = vunpack.c.l.b16 %v1417
    %v1538 = vunpack.c.h.b16 %v1417
    %v1539 = vunpack.c.l.b16 %v1418
    %v1540 = vunpack.c.h.b16 %v1418
    %v1541 = vunpack.c.l.b16 %v1419
    %v1542 = vunpack.c.h.b16 %v1419
    %v1543 = vunpack.c.l.b16 %v1420
    %v1544 = vunpack.c.h.b16 %v1420
    %v1545 = vunpack.c.l.b16 %v1421
    %v1546 = vunpack.c.h.b16 %v1421
    %v1547 = vunpack.c.l.b16 %v1422
    %v1548 = vunpack.c.h.b16 %v1422
    %v1549 = vunpack.c.l.b16 %v1423
    %v1550 = vunpack.c.h.b16 %v1423
    %v1551 = vunpack.c.l.b16 %v1424
    %v1552 = vunpack.c.h.b16 %v1424
    %v1553 = vunpack.c.l.b16 %v1425
    %v1554 = vunpack.c.h.b16 %v1425
    %v1555 = vunpack.c.l.b16 %v1426
    %v1556 = vunpack.c.h.b16 %v1426
    %v1557 = vunpack.c.l.b16 %v1427
    %v1558 = vunpack.c.h.b16 %v1427
    %v1559 = vunpack.c.l.b16 %v1428
    %v1560 = vunpack.c.h.b16 %v1428
    %v1561 = vunpack.c.l.b16 %v1429
    %v1562 = vunpack.c.h.b16 %v1429
    %v1563 = vunpack.c.l.b16 %v1430
    %v1564 = vunpack.c.h.b16 %v1430
    %v1565 = vunpack.c.l.b16 %v1431
    %v1566 = vunpack.c.h.b16 %v1431
    %v1567 = vunpack.c.l.b16 %v1432
    %v1568 = vunpack.c.h.b16 %v1432
    %v1569 = vunpack.c.l.b16 %v1433
    %v1570 = vunpack.c.h.b16 %v1433
    %v1571 = vpack.c.b16 %v1515, %v1507
    %v1572 = vpack.c.b16 %v1516, %v1508
    %v1573 = vpack.c.b16 %v1517, %v1509
    %v1574 = vpack.c.b16 %v1518, %v1510
    %v1575 = vpack.c.b16 %v1519, %v1511
    %v1576 = vpack.c.b16 %v1520, %v1512
    %v1577 = vpack.c.b16 %v1521, %v1513
    %v1578 = vpack.c.b16 %v1522, %v1514
    %v1579 = vpack.c.b16 %v1531, %v1523
    %v1580 = vpack.c.b16 %v1532, %v1524
    %v1581 = vpack.c.b16 %v1533, %v1525
    %v1582 = vpack.c.b16 %v1534, %v1526
    %v1583 = vpack.c.b16 %v1535, %v1527
    %v1584 = vpack.c.b16 %v1536, %v1528
    %v1585 = vpack.c.b16 %v1537, %v1529
    %v1586 = vpack.c.b16 %v1538, %v1530
    %v1587 = vpack.c.b16 %v1547, %v1539
    %v1588 = vpack.c.b16 %v1548, %v1540
    %v1589 = vpack.c.b16 %v1549, %v1541
    %v1590 = vpack.c.b16 %v1550, %v1542
    %v1591 = vpack.c.b16 %v1551, %v1543
    %v1592 = vpack.c.b16 %v1552, %v1544
    %v1593 = vpack.c.b16 %v1553, %v1545
    %v1594 = vpack.c.b16 %v1554, %v1546
    %v1595 = vpack.c.b16 %v1563, %v1555
    %v1596 = vpack.c.b16 %v1564, %v1556
    %v1597 = vpack.c.b16 %v1565, %v1557
    %v1598 = vpack.c.b16 %v1566, %v1558
    %v1599 = vpack.c.b16 %v1567, %v1559
    %v1600 = vpack.c.b16 %v1568, %v1560
    %v1601 = vpack.c.b16 %v1569, %v1561
    %v1602 = vpack.c.b16 %v1570, %v1562
    %v1636 = vsel %vm492, %v1401, 0
    %1638 = vmatprep.subr.bf16.mxu0 %v1572
    %1639 = vmatpush1.bf16.msra.mxu0 %v1571
    %1640 = vmatprep.subr.bf16.mxu0 %v1580
    %1641 = vmatpush1.bf16.msra.mxu0 %v1579
    %1642 = vmatprep.subr.bf16.mxu0 %v1588
    %1643 = vmatpush1.bf16.msra.mxu0 %v1587
    %1644 = vmatprep.subr.bf16.mxu0 %v1596
    %1645 = vmatpush1.bf16.msra.mxu0 %v1595
    %1646 = vmatprep.subr.bf16.mxu0 0
    %1647 = vmatpush1.bf16.msra.mxu0 0
    %1648 = vmatprep.subr.bf16.mxu0 0
    %1649 = vmatpush1.bf16.msra.mxu0 0
    %1650 = vmatprep.subr.bf16.mxu0 0
    %1651 = vmatpush1.bf16.msra.mxu0 0
    %1652 = vmatprep.subr.bf16.mxu0 0
    %1653 = vmatpush1.bf16.msra.mxu0 0
    %1654 = vmatprep.subr.bf16.mxu0 0
    %1655 = vmatpush1.bf16.msra.mxu0 0
    %1656 = vmatprep.subr.bf16.mxu0 0
    %1657 = vmatpush1.bf16.msra.mxu0 0
    %1658 = vmatprep.subr.bf16.mxu0 0
    %1659 = vmatpush1.bf16.msra.mxu0 0
    %1660 = vmatprep.subr.bf16.mxu0 0
    %1661 = vmatpush1.bf16.msra.mxu0 0
    %1662 = vmatprep.subr.bf16.mxu0 0
    %1663 = vmatpush1.bf16.msra.mxu0 0
    %1664 = vmatprep.subr.bf16.mxu0 0
    %1665 = vmatpush1.bf16.msra.mxu0 0
    %1666 = vmatprep.subr.bf16.mxu0 0
    %1667 = vmatpush1.bf16.msra.mxu0 0
    %1668 = vmatprep.subr.bf16.mxu0 0
    %1669 = vmatpush1.bf16.msra.mxu0 0
    %1670 = vmatprep.mubr.bf16.mxu0 0
    %1671 = vmatmul.mubr.bf16.gmra.mrb[0].mxu0 %v1636
    %v1672 = vpop.f32.mrb[0].mxu0
    %v1673 = vadd.f32 %v1438, %v1672
    %v1674 = vpop.f32.mrb[0].mxu0
    %v1675 = vadd.f32 %v1442, %v1674
    %v1676 = vpop.f32.mrb[0].mxu0
    %v1677 = vpop.f32.mrb[0].mxu0
    %1678 = vdwg.mxu0
    %1679 = vmatprep.subr.bf16.mxu0 %v1574
    %1680 = vmatpush1.bf16.msra.mxu0 %v1573
    %1681 = vmatprep.subr.bf16.mxu0 %v1582
    %1682 = vmatpush1.bf16.msra.mxu0 %v1581
    %1683 = vmatprep.subr.bf16.mxu0 %v1590
    %1684 = vmatpush1.bf16.msra.mxu0 %v1589
    %1685 = vmatprep.subr.bf16.mxu0 %v1598
    %1686 = vmatpush1.bf16.msra.mxu0 %v1597
    %1687 = vmatprep.subr.bf16.mxu0 0
    %1688 = vmatpush1.bf16.msra.mxu0 0
    %1689 = vmatprep.subr.bf16.mxu0 0
    %1690 = vmatpush1.bf16.msra.mxu0 0
    %1691 = vmatprep.subr.bf16.mxu0 0
    %1692 = vmatpush1.bf16.msra.mxu0 0
    %1693 = vmatprep.subr.bf16.mxu0 0
    %1694 = vmatpush1.bf16.msra.mxu0 0
    %1695 = vmatprep.subr.bf16.mxu0 0
    %1696 = vmatpush1.bf16.msra.mxu0 0
    %1697 = vmatprep.subr.bf16.mxu0 0
    %1698 = vmatpush1.bf16.msra.mxu0 0
    %1699 = vmatprep.subr.bf16.mxu0 0
    %1700 = vmatpush1.bf16.msra.mxu0 0
    %1701 = vmatprep.subr.bf16.mxu0 0
    %1702 = vmatpush1.bf16.msra.mxu0 0
    %1703 = vmatprep.subr.bf16.mxu0 0
    %1704 = vmatpush1.bf16.msra.mxu0 0
    %1705 = vmatprep.subr.bf16.mxu0 0
    %1706 = vmatpush1.bf16.msra.mxu0 0
    %1707 = vmatprep.subr.bf16.mxu0 0
    %1708 = vmatpush1.bf16.msra.mxu0 0
    %1709 = vmatprep.subr.bf16.mxu0 0
    %1710 = vmatpush1.bf16.msra.mxu0 0
    %1711 = vmatprep.mubr.bf16.mxu0 0
    %1712 = vmatmul.mubr.bf16.gmra.mrb[0].mxu0 %v1636
    %v1713 = vpop.f32.mrb[0].mxu0
    %v1714 = vadd.f32 %v1446, %v1713
    %v1715 = vpop.f32.mrb[0].mxu0
    %v1716 = vadd.f32 %v1450, %v1715
    %v1717 = vpop.f32.mrb[0].mxu0
    %v1718 = vpop.f32.mrb[0].mxu0
    %1719 = vdwg.mxu0
    %1720 = vmatprep.subr.bf16.mxu0 %v1576
    %1721 = vmatpush1.bf16.msra.mxu0 %v1575
    %1722 = vmatprep.subr.bf16.mxu0 %v1584
    %1723 = vmatpush1.bf16.msra.mxu0 %v1583
    %1724 = vmatprep.subr.bf16.mxu0 %v1592
    %1725 = vmatpush1.bf16.msra.mxu0 %v1591
    %1726 = vmatprep.subr.bf16.mxu0 %v1600
    %1727 = vmatpush1.bf16.msra.mxu0 %v1599
    %1728 = vmatprep.subr.bf16.mxu0 0
    %1729 = vmatpush1.bf16.msra.mxu0 0
    %1730 = vmatprep.subr.bf16.mxu0 0
    %1731 = vmatpush1.bf16.msra.mxu0 0
    %1732 = vmatprep.subr.bf16.mxu0 0
    %1733 = vmatpush1.bf16.msra.mxu0 0
    %1734 = vmatprep.subr.bf16.mxu0 0
    %1735 = vmatpush1.bf16.msra.mxu0 0
    %1736 = vmatprep.subr.bf16.mxu0 0
    %1737 = vmatpush1.bf16.msra.mxu0 0
    %1738 = vmatprep.subr.bf16.mxu0 0
    %1739 = vmatpush1.bf16.msra.mxu0 0
    %1740 = vmatprep.subr.bf16.mxu0 0
    %1741 = vmatpush1.bf16.msra.mxu0 0
    %1742 = vmatprep.subr.bf16.mxu0 0
    %1743 = vmatpush1.bf16.msra.mxu0 0
    %1744 = vmatprep.subr.bf16.mxu0 0
    %1745 = vmatpush1.bf16.msra.mxu0 0
    %1746 = vmatprep.subr.bf16.mxu0 0
    %1747 = vmatpush1.bf16.msra.mxu0 0
    %1748 = vmatprep.subr.bf16.mxu0 0
    %1749 = vmatpush1.bf16.msra.mxu0 0
    %1750 = vmatprep.subr.bf16.mxu0 0
    %1751 = vmatpush1.bf16.msra.mxu0 0
    %1752 = vmatprep.mubr.bf16.mxu0 0
    %1753 = vmatmul.mubr.bf16.gmra.mrb[0].mxu0 %v1636
    %v1754 = vpop.f32.mrb[0].mxu0
    %v1755 = vadd.f32 %v1454, %v1754
    %v1756 = vpop.f32.mrb[0].mxu0
    %v1757 = vadd.f32 %v1458, %v1756
    %v1758 = vpop.f32.mrb[0].mxu0
    %v1759 = vpop.f32.mrb[0].mxu0
    %1760 = vdwg.mxu0
    %1761 = vmatprep.subr.bf16.mxu0 %v1578
    %1762 = vmatpush1.bf16.msra.mxu0 %v1577
    %1763 = vmatprep.subr.bf16.mxu0 %v1586
    %1764 = vmatpush1.bf16.msra.mxu0 %v1585
    %1765 = vmatprep.subr.bf16.mxu0 %v1594
    %1766 = vmatpush1.bf16.msra.mxu0 %v1593
    %1767 = vmatprep.subr.bf16.mxu0 %v1602
    %1768 = vmatpush1.bf16.msra.mxu0 %v1601
    %1769 = vmatprep.subr.bf16.mxu0 0
    %1770 = vmatpush1.bf16.msra.mxu0 0
    %1771 = vmatprep.subr.bf16.mxu0 0
    %1772 = vmatpush1.bf16.msra.mxu0 0
    %1773 = vmatprep.subr.bf16.mxu0 0
    %1774 = vmatpush1.bf16.msra.mxu0 0
    %1775 = vmatprep.subr.bf16.mxu0 0
    %1776 = vmatpush1.bf16.msra.mxu0 0
    %1777 = vmatprep.subr.bf16.mxu0 0
    %1778 = vmatpush1.bf16.msra.mxu0 0
    %1779 = vmatprep.subr.bf16.mxu0 0
    %1780 = vmatpush1.bf16.msra.mxu0 0
    %1781 = vmatprep.subr.bf16.mxu0 0
    %1782 = vmatpush1.bf16.msra.mxu0 0
    %1783 = vmatprep.subr.bf16.mxu0 0
    %1784 = vmatpush1.bf16.msra.mxu0 0
    %1785 = vmatprep.subr.bf16.mxu0 0
    %1786 = vmatpush1.bf16.msra.mxu0 0
    %1787 = vmatprep.subr.bf16.mxu0 0
    %1788 = vmatpush1.bf16.msra.mxu0 0
    %1789 = vmatprep.subr.bf16.mxu0 0
    %1790 = vmatpush1.bf16.msra.mxu0 0
    %1791 = vmatprep.subr.bf16.mxu0 0
    %1792 = vmatpush1.bf16.msra.mxu0 0
    %1793 = vmatprep.mubr.bf16.mxu0 0
    %1794 = vmatmul.mubr.bf16.gmra.mrb[0].mxu0 %v1636
    %v1795 = vpop.f32.mrb[0].mxu0
    %v1796 = vadd.f32 %v1462, %v1795
    %v1797 = vpop.f32.mrb[0].mxu0
    %v1798 = vadd.f32 %v1466, %v1797
    %v1799 = vpop.f32.mrb[0].mxu0
    %v1800 = vpop.f32.mrb[0].mxu0
    %1801 = vdwg.mxu0
    %v1802 = vmul.f32 %v1673, %v1755
    %v1803 = vmul.f32 %v1675, %v1757
    %v1804 = vmul.f32 %v1714, %v1796
    %v1805 = vmul.f32 %v1716, %v1798
    %v1806 = vld [vmem:[%s5 + $0xa] sm:$0x1]
    %v1807 = vadd.f32 %v1802, %v1803
    %v1808 = vadd.f32 %v1807, %v1804
    %v1809 = vadd.f32 %v1808, %v1805
    %1810 = vrot.lane.b32.xlu0 %v1809, 64
    %v1811 = vpop.permute.xlu0 %1810
    %v1812 = vadd.f32 %v1809, %v1811
    %v1814 = vlaneseq
    %v1815 = vshrl.u32 %v1814, 7
    %v1816 = vsub.s32 0, %v1815
    %v1817 = vrot.slane %v1806, %v1816
    %v1819 = vadd.f32 %v1812, %v1817
    %v1820 = vld [vmem:[%s5 + $0xb] sm:$0x1]
    %v1821 = vld [vmem:[#allocation10] sm:$0xff]
    %v1822 = vld [vmem:[#allocation10 + $0x8] sm:$0xff]
    %v1823 = vld [vmem:[#allocation10 + $0x10] sm:$0xff]
    %v1824 = vld [vmem:[#allocation10 + $0x18] sm:$0xff]
    %v1825 = vld [vmem:[#allocation10 + $0x20] sm:$0xff]
    %v1826 = vld [vmem:[#allocation10 + $0x28] sm:$0xff]
    %v1827 = vld [vmem:[#allocation10 + $0x30] sm:$0xff]
    %v1828 = vld [vmem:[#allocation10 + $0x38] sm:$0xff]
    %v1830 = vlaneseq
    %v1831 = vshrl.u32 %v1830, 7
    %v1832 = vsub.s32 0, %v1831
    %v1833 = vrot.slane %v1820, %v1832
    %v1836 = vsel %vm492, %v1819, 0
    %1838 = vmatprep.subr.mxu0 0.0
    %1839 = vmatpush1.msra.mxu0 %v1821
    %1840 = vmatprep.subr.mxu0 0.0
    %1841 = vmatpush1.msra.mxu0 %v1822
    %1842 = vmatprep.subr.mxu0 0.0
    %1843 = vmatpush1.msra.mxu0 %v1823
    %1844 = vmatprep.subr.mxu0 0.0
    %1845 = vmatpush1.msra.mxu0 %v1824
    %1846 = vmatprep.subr.mxu0 0.0
    %1847 = vmatpush1.msra.mxu0 %v1825
    %1848 = vmatprep.subr.mxu0 0.0
    %1849 = vmatpush1.msra.mxu0 %v1826
    %1850 = vmatprep.subr.mxu0 0.0
    %1851 = vmatpush1.msra.mxu0 %v1827
    %1852 = vmatprep.subr.mxu0 0.0
    %1853 = vmatpush1.msra.mxu0 %v1828
    %1854 = vmatprep.subr.mxu0 0.0
    %1855 = vmatpush1.msra.mxu0 0.0
    %1856 = vmatprep.subr.mxu0 0.0
    %1857 = vmatpush1.msra.mxu0 0.0
    %1858 = vmatprep.subr.mxu0 0.0
    %1859 = vmatpush1.msra.mxu0 0.0
    %1860 = vmatprep.subr.mxu0 0.0
    %1861 = vmatpush1.msra.mxu0 0.0
    %1862 = vmatprep.subr.mxu0 0.0
    %1863 = vmatpush1.msra.mxu0 0.0
    %1864 = vmatprep.subr.mxu0 0.0
    %1865 = vmatpush1.msra.mxu0 0.0
    %1866 = vmatprep.subr.mxu0 0.0
    %1867 = vmatpush1.msra.mxu0 0.0
    %1868 = vmatprep.subr.mxu0 0.0
    %1869 = vmatpush1.msra.mxu0 0.0
    %1870 = vmatprep.subr.mxu0 0.0
    %1871 = vmatpush1.msra.mxu0 0.0
    %1872 = vmatprep.subr.mxu0 0.0
    %1873 = vmatpush1.msra.mxu0 0.0
    %1874 = vmatprep.subr.mxu0 0.0
    %1875 = vmatpush1.msra.mxu0 0.0
    %1876 = vmatprep.subr.mxu0 0.0
    %1877 = vmatpush1.msra.mxu0 0.0
    %1878 = vmatprep.subr.mxu0 0.0
    %1879 = vmatpush1.msra.mxu0 0.0
    %1880 = vmatprep.subr.mxu0 0.0
    %1881 = vmatpush1.msra.mxu0 0.0
    %1882 = vmatprep.subr.mxu0 0.0
    %1883 = vmatpush1.msra.mxu0 0.0
    %1884 = vmatprep.subr.mxu0 0.0
    %1885 = vmatpush1.msra.mxu0 0.0
    %1886 = vmatprep.subr.mxu0 0.0
    %1887 = vmatpush1.msra.mxu0 0.0
    %1888 = vmatprep.subr.mxu0 0.0
    %1889 = vmatpush1.msra.mxu0 0.0
    %1890 = vmatprep.subr.mxu0 0.0
    %1891 = vmatpush1.msra.mxu0 0.0
    %1892 = vmatprep.subr.mxu0 0.0
    %1893 = vmatpush1.msra.mxu0 0.0
    %1894 = vmatprep.subr.mxu0 0.0
    %1895 = vmatpush1.msra.mxu0 0.0
    %1896 = vmatprep.subr.mxu0 0.0
    %1897 = vmatpush1.msra.mxu0 0.0
    %1898 = vmatprep.subr.mxu0 0.0
    %1899 = vmatpush1.msra.mxu0 0.0
    %1900 = vmatprep.subr.mxu0 0.0
    %1901 = vmatpush1.msra.mxu0 0.0
    %1902 = vmatprep.mubr.f32.mxu0 0.0
    %1903 = vmatmul.mubr.f32.gmra.mrb[0].mxu0 %v1836
    %v1904 = vpop.f32.mrb[0].mxu0
    %v1905 = vadd.f32 %v1833, %v1904
    %v1906 = vpop.f32.mrb[0].mxu0
    %1907 = vdwg.mxu0
    %v1908 = vxor.u32 %v1905, 2147483648
    %v1909 = vmul.f32 %v1908, 1.442695
    %v1910 = vpow.pop %v1909
    %v1911 = vadd.f32 %v1910, 1.0
    %v1912 = vrcp.pop %v1911
    %v1913 = vmul.f32 1.0, %v1912
    %1915 = vrot.lane.b32.xlu0 %v1913, 64
    %v1916 = vpop.permute.xlu0 %1915
    %v1918 = vsel %vm492, %v1819, %v1916
    %1919 = vst [vmem:[#allocation11] sm:$0x3] %v1918
    // Predicated region
    $region46: #{tpu_custom_call.1} parent=1 // pred_check
      _
    $region47: #{tpu_custom_call.1} parent=1 // pred_check_branch
      %1921 = sbr.rel (0) target = $region49
    $region48: #{tpu_custom_call.1} parent=1 // pred_region
      %s1923 = ssub.s32 32, 32
      %1924 = vsyncadd [#allocation4], %s1923
      %s1926 = sshll.u32 [#allocation11], 4
      %s1927 = int_to_ptr.vmem [resolvable:$true] %s1926
      %1929 = dma.vmem_to_hbm [thread:$0]  %s1927, 32, %s6, [#allocation4]
    $region49: #{tpu_custom_call.1} parent=1 // pred_fallthru
      _
    // Predicated region
    $region50: #{tpu_custom_call.1} parent=1 // pred_check
      _
    $region51: #{tpu_custom_call.1} parent=1 // pred_check_branch
      %1931 = sbr.rel (0) target = $region53
    $region52: #{tpu_custom_call.1} parent=1 // pred_region
      %1932 = dma.done [#allocation4], 32
    $region53: #{tpu_custom_call.1} parent=1 // pred_fallthru
      _
    %1933 = vsyncpa [#allocation3], 1
    %1934 = vsyncpa [#allocation6], 1
    %1935 = vsyncpa [#allocation9], 1
    %1936 = vsyncpa [#allocation4], 1

</llo_original>
